<compile_context>
chip_gen: v7x
topology: tpu7x:2x2x1
jax: 0.10.0
libtpu: 0.0.40
codegen_flags: <defaults>
</compile_context>

<pallas_src>
import jax
import jax.numpy as jnp
from jax import lax
from jax.experimental import pallas as pl
from jax.experimental.pallas import tpu as pltpu

# ----------------------------------------------------------------------------
# Small synthetic BERT config (stand-in for 'bert-base-uncased' at toy scale).
# ----------------------------------------------------------------------------
VOCAB = 100
HIDDEN = 32
N_HEADS = 2
HEAD_DIM = HIDDEN // N_HEADS
N_LAYERS = 2
INTERMEDIATE = 64
MAX_POS = 16
LN_EPS = 1e-12

# Lane-dense (padded) Pallas-side dims.
LANE = 128
HP = max(LANE, ((HIDDEN + LANE - 1) // LANE) * LANE)          # padded hidden = 128
IP = max(LANE, ((INTERMEDIATE + LANE - 1) // LANE) * LANE)    # padded intermediate = 128

# Packed f32 vector-parameter rows (biases / LN params), one (VROWS, HP) input.
R_EMB_G = 0          # embedding LN gamma
R_EMB_B = 1          # embedding LN beta
LAYER_VEC_ROWS = 10  # per layer: bq, bk, bv, bo, ln1_g, ln1_b, bi, bf, ln2_g, ln2_b
_VROWS_RAW = 2 + N_LAYERS * LAYER_VEC_ROWS
VROWS = ((_VROWS_RAW + 7) // 8) * 8                           # pad to sublane multiple

_COMPILER_PARAMS = pltpu.CompilerParams(
    dimension_semantics=("parallel",),          # v7x: 2 grid steps -> 2 TensorCores
    vmem_limit_bytes=32 * 1024 * 1024,          # safe on v5e/v6e/v7x; kernel uses <1 MiB
)


# ----------------------------------------------------------------------------
# In-kernel helpers
# ----------------------------------------------------------------------------
def _masked_layernorm(x, g, b):
    """LayerNorm over the first HIDDEN lanes of a zero-padded (rows, HP) block.

    Precondition: padded lanes of x are zero.  g/b are zero-padded, so padded
    lanes of the output are zero as well (invariant maintained throughout).
    """
    lane_idx = lax.broadcasted_iota(jnp.int32, x.shape, x.ndim - 1)
    valid = lane_idx < HIDDEN
    mean = jnp.sum(x, axis=-1, keepdims=True) * (1.0 / HIDDEN)          # pads are 0
    xc = x - mean
    var = jnp.sum(jnp.where(valid, xc * xc, 0.0), axis=-1, keepdims=True) * (1.0 / HIDDEN)
    inv = lax.rsqrt(var + LN_EPS)
    return xc * inv * g + b


def _gelu(x):
    # tanh-approx GELU  # TODO(synk): HF BERT default is erf-based gelu ('gelu')
    return 0.5 * x * (1.0 + jnp.tanh(0.7978845608028654 * (x + 0.044715 * x * x * x)))


# ----------------------------------------------------------------------------
# The single fused encoder kernel: one sequence per grid step.
#   emb_ref : (S, HP)            f32, lane-padded embeddings (pads are zero)
#   w_ref   : (N_LAYERS, HP, 6*HP) bf16, per layer cols = [wq|wk|wv|wo|wi|wf]
#   vec_ref : (VROWS, HP)        f32, packed biases / LN params
#   o_ref   : (S, HP)            f32, final hidden states for this sequence
# ----------------------------------------------------------------------------
def _encoder_kernel(emb_ref, w_ref, vec_ref, o_ref):
    vecs = vec_ref[...]                                   # (VROWS, HP), resident

    def vrow(r):
        return vecs[r:r + 1, :]                           # (1, HP)

    x = _masked_layernorm(emb_ref[...], vrow(R_EMB_G), vrow(R_EMB_B))   # (S, HP)
    S = x.shape[0]
    lane = lax.broadcasted_iota(jnp.int32, (S, HP), 1)

    for l in range(N_LAYERS):                             # static unroll (2 layers)
        wqkv = w_ref[l, :, 0:3 * HP]                      # (HP, 3HP) bf16
        wo = w_ref[l, :, 3 * HP:4 * HP]                   # (HP, HP)  bf16
        wi = w_ref[l, :, 4 * HP:5 * HP]                   # (HP, IP)  bf16
        wf = w_ref[l, :, 5 * HP:6 * HP]                   # (IP, HP)  bf16
        base = 2 + l * LAYER_VEC_ROWS

        def g(k, _base=base):
            return vrow(_base + k)

        # ---- fused QKV projection (scale 1/sqrt(Dh) folded into wq/bq) -----
        qkv = jnp.dot(x.astype(jnp.bfloat16), wqkv,
                      preferred_element_type=jnp.float32)           # (S, 3HP)
        q = qkv[:, 0:HP] + g(0)
        k = qkv[:, HP:2 * HP] + g(1)
        v = qkv[:, 2 * HP:3 * HP] + g(2)

        # ---- all heads in a single pair of MXU dots -------------------------
        # Stack per-head lane-masked K / V along sublanes -> (NH*S, HP).
        k_stack = jnp.concatenate(
            [jnp.where((lane >= h * HEAD_DIM) & (lane < (h + 1) * HEAD_DIM), k, 0.0)
             for h in range(N_HEADS)], axis=0).astype(jnp.bfloat16)
        v_stack = jnp.concatenate(
            [jnp.where((lane >= h * HEAD_DIM) & (lane < (h + 1) * HEAD_DIM), v, 0.0)
             for h in range(N_HEADS)], axis=0).astype(jnp.bfloat16)

        # scores[:, h*S:(h+1)*S] == q_h @ k_h^T  (no transpose materialized)
        s = lax.dot_general(q.astype(jnp.bfloat16), k_stack,
                            (((1,), (1,)), ((), ())),
                            preferred_element_type=jnp.float32)     # (S, NH*S)

        # segmented softmax: independent softmax over each head's S columns
        col = lax.broadcasted_iota(jnp.int32, s.shape, 1)
        p = jnp.zeros_like(s)
        for h in range(N_HEADS):
            blk = (col >= h * S) & (col < (h + 1) * S)
            m = jnp.max(jnp.where(blk, s, -1e30), axis=-1, keepdims=True)
            e = jnp.where(blk, jnp.exp(s - m), 0.0)
            p = p + e * pl.reciprocal(jnp.sum(e, axis=-1, keepdims=True), approx=True)

        # ctx: each head writes only its own 16 lanes (masked V) -> merged heads
        ctx = jnp.dot(p.astype(jnp.bfloat16), v_stack,
                      preferred_element_type=jnp.float32)           # (S, HP)

        # ---- attn-out proj + residual + LN1 + FFN(gelu) + residual + LN2 ----
        attn = (jnp.dot(ctx.astype(jnp.bfloat16), wo,
                        preferred_element_type=jnp.float32) + g(3) + x)
        h1 = _masked_layernorm(attn, g(4), g(5))
        inter = _gelu(jnp.dot(h1.astype(jnp.bfloat16), wi,
                              preferred_element_type=jnp.float32) + g(6))
        ffn = (jnp.dot(inter.astype(jnp.bfloat16), wf,
                       preferred_element_type=jnp.float32) + g(7) + h1)
        x = _masked_layernorm(ffn, g(8), g(9))

    o_ref[...] = x.astype(o_ref.dtype)                    # lane-dense store


def encoder_pallas(x, w_all, vecs, seq_len):
    """x: (B*S, HP) lane-padded embeddings -> (B*S, HP) final hidden states."""
    M, H = x.shape
    n_seq = M // seq_len
    return pl.pallas_call(
        _encoder_kernel,
        out_shape=jax.ShapeDtypeStruct((M, H), jnp.float32),
        grid=(n_seq,),
        in_specs=[
            pl.BlockSpec((seq_len, H), lambda b: (b, 0)),             # this sequence
            pl.BlockSpec((N_LAYERS, HP, 6 * HP), lambda b: (0, 0, 0)),  # all weights
            pl.BlockSpec((VROWS, HP), lambda b: (0, 0)),              # packed vectors
        ],
        out_specs=pl.BlockSpec((seq_len, H), lambda b: (b, 0)),
        compiler_params=_COMPILER_PARAMS,
    )(x, w_all, vecs)


# ----------------------------------------------------------------------------
# Deterministic parameter init (synthetic, BERT-shaped, pre-padded / pre-fused)
# ----------------------------------------------------------------------------
def init_params(key):
    def nrm(k, shape, scale=0.02):
        return (scale * jax.random.normal(k, shape)).astype(jnp.float32)

    def pad_w(w, rows, cols):
        return jnp.pad(w, ((0, rows - w.shape[0]), (0, cols - w.shape[1])))

    def pad_cols(w, cols):
        return jnp.pad(w, ((0, 0), (0, cols - w.shape[1])))

    def row_vec(v):
        return jnp.pad(v, (0, HP - v.shape[0])).reshape(1, HP)

    keys = iter(jax.random.split(key, 32))
    ones_h = row_vec(jnp.ones((HIDDEN,), jnp.float32))
    zeros_h = jnp.zeros((1, HP), jnp.float32)

    # Embedding tables lane-padded ONCE here (no runtime jnp.pad in the wrapper).
    params = {
        "word_emb": pad_cols(nrm(next(keys), (VOCAB, HIDDEN)), HP),
        "pos_emb": pad_cols(nrm(next(keys), (MAX_POS, HIDDEN)), HP),
        "type_emb": pad_cols(nrm(next(keys), (2, HIDDEN)), HP),
        "pool_w": nrm(next(keys), (HIDDEN, HIDDEN)),       # pooler stays in plain jnp
        "pool_b": jnp.zeros((HIDDEN,), jnp.float32),
    }

    scale = 1.0 / (HEAD_DIM ** 0.5)
    vec_rows = [None] * VROWS
    vec_rows[R_EMB_G] = ones_h
    vec_rows[R_EMB_B] = zeros_h

    layer_slabs = []
    for l in range(N_LAYERS):
        wq = nrm(next(keys), (HIDDEN, HIDDEN)) * scale     # fold 1/sqrt(Dh) into Wq
        wk = nrm(next(keys), (HIDDEN, HIDDEN))
        wv = nrm(next(keys), (HIDDEN, HIDDEN))
        wo = nrm(next(keys), (HIDDEN, HIDDEN))
        wi = nrm(next(keys), (HIDDEN, INTERMEDIATE))
        wf = nrm(next(keys), (INTERMEDIATE, HIDDEN))
        slab = jnp.concatenate(
            [pad_w(wq, HP, HP), pad_w(wk, HP, HP), pad_w(wv, HP, HP),
             pad_w(wo, HP, HP), pad_w(wi, HP, IP), pad_w(wf, IP, HP)], axis=1)
        layer_slabs.append(slab)

        base = 2 + l * LAYER_VEC_ROWS
        bq = jnp.zeros((HIDDEN,), jnp.float32) * scale     # scaled (zero anyway)
        layer_vecs = [
            row_vec(bq),                                   # bq
            zeros_h, zeros_h,                              # bk, bv
            zeros_h,                                       # bo
            ones_h, zeros_h,                               # ln1 gamma / beta
            jnp.zeros((1, IP), jnp.float32),               # bi (IP == HP)
            zeros_h,                                       # bf
            ones_h, zeros_h,                               # ln2 gamma / beta
        ]
        for k, v in enumerate(layer_vecs):
            vec_rows[base + k] = v

    for r in range(VROWS):
        if vec_rows[r] is None:
            vec_rows[r] = zeros_h

    params["w_all"] = jnp.stack(layer_slabs, axis=0).astype(jnp.bfloat16)  # (L, HP, 6HP)
    params["vecs"] = jnp.concatenate(vec_rows, axis=0)                     # (VROWS, HP)
    return params


# ----------------------------------------------------------------------------
# TextEncoder forward: BERT encoder -> pooler_output = tanh(W @ h[:,0] + b)
# (No attention mask: HF BertModel(input_ids) defaults to an all-ones mask.)
# ----------------------------------------------------------------------------
def text_encoder_forward(params, input_ids):
    B, S = input_ids.shape
    # TODO(synk): assumes S <= MAX_POS and no padding tokens (all-ones attention mask).
    emb = (params["word_emb"][input_ids]                     # already lane-padded
           + params["pos_emb"][:S][None, :, :]
           + params["type_emb"][0][None, None, :])           # token_type_ids = 0

    # Single fused Pallas kernel: emb-LN + both encoder layers, one seq per step.
    hidden = encoder_pallas(emb.reshape(B * S, HP).astype(jnp.float32),
                            params["w_all"], params["vecs"], S)

    # Pooler in plain jnp (tiny (B,32)@(32,32) — cheaper than a kernel launch).
    cls = hidden.reshape(B, S, HP)[:, 0, :HIDDEN]
    return jnp.tanh(cls @ params["pool_w"] + params["pool_b"])   # 'pooler_output'


# ----------------------------------------------------------------------------
if __name__ == "__main__":
    key = jax.random.PRNGKey(0)
    pkey, dkey = jax.random.split(key)
    params = init_params(pkey)

    B, S = 2, 8
    input_ids = jax.random.randint(dkey, (B, S), 0, VOCAB, dtype=jnp.int32)

    fwd = jax.jit(text_encoder_forward)
    pooled = jax.block_until_ready(fwd(params, input_ids))

    assert pooled.shape == (B, HIDDEN)
    assert pooled.dtype == jnp.float32
    print("KERNEL_OK")
</pallas_src>

<mosaic_0001>
module attributes {stable_mosaic.version = 11 : i64} {
  func.func @_encoder_kernel(%arg0: i32, %arg1: memref<8x128xf32, #tpu.memory_space<vmem>>, %arg2: memref<2x128x768xbf16, #tpu.memory_space<vmem>>, %arg3: memref<24x128xf32, #tpu.memory_space<vmem>>, %arg4: memref<8x128xf32, #tpu.memory_space<vmem>>) attributes {dimension_semantics = [#tpu.dimension_semantics<parallel>], iteration_bounds = array<i64: 2>, scalar_prefetch = 0 : i64, scratch_operands = 0 : i64, tpu.core_type = #tpu.core_type<tc>, window_params = [{transform_indices = @transform_0, window_bounds = array<i64: 8, 128>}, {pipeline_mode = #tpu.pipeline_mode<synchronous>, transform_indices = @transform_1, window_bounds = array<i64: 2, 128, 768>}, {pipeline_mode = #tpu.pipeline_mode<synchronous>, transform_indices = @transform_2, window_bounds = array<i64: 24, 128>}, {transform_indices = @transform_3, window_bounds = array<i64: 8, 128>}]} {
    %c0 = arith.constant 0 : index
    %c0_0 = arith.constant 0 : index
    %0 = vector.load %arg3[%c0, %c0_0] : memref<24x128xf32, #tpu.memory_space<vmem>>, vector<24x128xf32>
    %c0_1 = arith.constant 0 : index
    %c0_2 = arith.constant 0 : index
    %1 = vector.load %arg1[%c0_1, %c0_2] : memref<8x128xf32, #tpu.memory_space<vmem>>, vector<8x128xf32>
    %2 = vector.extract_strided_slice %0 {offsets = [0, 0], sizes = [1, 128], strides = [1, 1]} : vector<24x128xf32> to vector<1x128xf32>
    %3 = vector.extract_strided_slice %0 {offsets = [1, 0], sizes = [1, 128], strides = [1, 1]} : vector<24x128xf32> to vector<1x128xf32>
    %4 = tpu.iota {dimensions = array<i32: 1>} : vector<8x128xi32>
    %c32_i32 = arith.constant 32 : i32
    %5 = vector.broadcast %c32_i32 : i32 to vector<8x128xi32>
    %6 = arith.cmpi slt, %4, %5 : vector<8x128xi32>
    %cst = arith.constant dense<0.000000e+00> : vector<8xf32>
    %7 = vector.multi_reduction <add>, %1, %cst [1] : vector<8x128xf32> to vector<8xf32>
    %8 = vector.shape_cast %7 : vector<8xf32> to vector<8x1xf32>
    %cst_3 = arith.constant 3.125000e-02 : f32
    %9 = vector.broadcast %cst_3 : f32 to vector<8x1xf32>
    %10 = arith.mulf %8, %9 : vector<8x1xf32>
    %11 = vector.broadcast %10 : vector<8x1xf32> to vector<8x128xf32>
    %12 = arith.subf %1, %11 : vector<8x128xf32>
    %13 = arith.mulf %12, %12 : vector<8x128xf32>
    %cst_4 = arith.constant 0.000000e+00 : f32
    %14 = vector.broadcast %cst_4 : f32 to vector<8x128xf32>
    %15 = arith.select %6, %13, %14 : vector<8x128xi1>, vector<8x128xf32>
    %cst_5 = arith.constant dense<0.000000e+00> : vector<8xf32>
    %16 = vector.multi_reduction <add>, %15, %cst_5 [1] : vector<8x128xf32> to vector<8xf32>
    %17 = vector.shape_cast %16 : vector<8xf32> to vector<8x1xf32>
    %cst_6 = arith.constant 3.125000e-02 : f32
    %18 = vector.broadcast %cst_6 : f32 to vector<8x1xf32>
    %19 = arith.mulf %17, %18 : vector<8x1xf32>
    %cst_7 = arith.constant 9.99999996E-13 : f32
    %20 = vector.broadcast %cst_7 : f32 to vector<8x1xf32>
    %21 = arith.addf %19, %20 : vector<8x1xf32>
    %22 = math.rsqrt %21 : vector<8x1xf32>
    %23 = vector.broadcast %22 : vector<8x1xf32> to vector<8x128xf32>
    %24 = arith.mulf %12, %23 : vector<8x128xf32>
    %25 = vector.broadcast %2 : vector<1x128xf32> to vector<8x128xf32>
    %26 = arith.mulf %24, %25 : vector<8x128xf32>
    %27 = vector.broadcast %3 : vector<1x128xf32> to vector<8x128xf32>
    %28 = arith.addf %26, %27 : vector<8x128xf32>
    %29 = tpu.iota {dimensions = array<i32: 1>} : vector<8x128xi32>
    %c0_8 = arith.constant 0 : index
    %c0_9 = arith.constant 0 : index
    %c0_10 = arith.constant 0 : index
    %30 = vector.load %arg2[%c0_8, %c0_9, %c0_10] : memref<2x128x768xbf16, #tpu.memory_space<vmem>>, vector<1x128x384xbf16>
    %31 = vector.shape_cast %30 : vector<1x128x384xbf16> to vector<128x384xbf16>
    %c0_11 = arith.constant 0 : index
    %c0_12 = arith.constant 0 : index
    %c384 = arith.constant 384 : index
    %32 = vector.load %arg2[%c0_11, %c0_12, %c384] : memref<2x128x768xbf16, #tpu.memory_space<vmem>>, vector<1x128x128xbf16>
    %33 = vector.shape_cast %32 : vector<1x128x128xbf16> to vector<128x128xbf16>
    %c0_13 = arith.constant 0 : index
    %c0_14 = arith.constant 0 : index
    %c512 = arith.constant 512 : index
    %34 = vector.load %arg2[%c0_13, %c0_14, %c512] : memref<2x128x768xbf16, #tpu.memory_space<vmem>>, vector<1x128x128xbf16>
    %35 = vector.shape_cast %34 : vector<1x128x128xbf16> to vector<128x128xbf16>
    %c0_15 = arith.constant 0 : index
    %c0_16 = arith.constant 0 : index
    %c640 = arith.constant 640 : index
    %36 = vector.load %arg2[%c0_15, %c0_16, %c640] : memref<2x128x768xbf16, #tpu.memory_space<vmem>>, vector<1x128x128xbf16>
    %37 = vector.shape_cast %36 : vector<1x128x128xbf16> to vector<128x128xbf16>
    %38 = arith.truncf %28 : vector<8x128xf32> to vector<8x128xbf16>
    %cst_17 = arith.constant dense<0.000000e+00> : vector<8x384xf32>
    %39 = tpu.matmul %38, %31, %cst_17 {dimension_numbers = #tpu.dot_dimension_numbers<[1], [0], [0], [1], [0, 0, 1, 1], [], []>} : vector<8x128xbf16>, vector<128x384xbf16>, vector<8x384xf32> -> vector<8x384xf32>
    %40 = vector.extract_strided_slice %39 {offsets = [0, 0], sizes = [8, 128], strides = [1, 1]} : vector<8x384xf32> to vector<8x128xf32>
    %41 = vector.extract_strided_slice %0 {offsets = [2, 0], sizes = [1, 128], strides = [1, 1]} : vector<24x128xf32> to vector<1x128xf32>
    %42 = vector.broadcast %41 : vector<1x128xf32> to vector<8x128xf32>
    %43 = arith.addf %40, %42 : vector<8x128xf32>
    %44 = vector.extract_strided_slice %39 {offsets = [0, 128], sizes = [8, 128], strides = [1, 1]} : vector<8x384xf32> to vector<8x128xf32>
    %45 = vector.extract_strided_slice %0 {offsets = [3, 0], sizes = [1, 128], strides = [1, 1]} : vector<24x128xf32> to vector<1x128xf32>
    %46 = vector.broadcast %45 : vector<1x128xf32> to vector<8x128xf32>
    %47 = arith.addf %44, %46 : vector<8x128xf32>
    %48 = vector.extract_strided_slice %39 {offsets = [0, 256], sizes = [8, 128], strides = [1, 1]} : vector<8x384xf32> to vector<8x128xf32>
    %49 = vector.extract_strided_slice %0 {offsets = [4, 0], sizes = [1, 128], strides = [1, 1]} : vector<24x128xf32> to vector<1x128xf32>
    %50 = vector.broadcast %49 : vector<1x128xf32> to vector<8x128xf32>
    %51 = arith.addf %48, %50 : vector<8x128xf32>
    %c0_i32 = arith.constant 0 : i32
    %52 = vector.broadcast %c0_i32 : i32 to vector<8x128xi32>
    %53 = arith.cmpi sge, %29, %52 : vector<8x128xi32>
    %c16_i32 = arith.constant 16 : i32
    %54 = vector.broadcast %c16_i32 : i32 to vector<8x128xi32>
    %55 = arith.cmpi slt, %29, %54 : vector<8x128xi32>
    %56 = arith.andi %53, %55 : vector<8x128xi1>
    %cst_18 = arith.constant 0.000000e+00 : f32
    %57 = vector.broadcast %cst_18 : f32 to vector<8x128xf32>
    %58 = arith.select %56, %47, %57 : vector<8x128xi1>, vector<8x128xf32>
    %c16_i32_19 = arith.constant 16 : i32
    %59 = vector.broadcast %c16_i32_19 : i32 to vector<8x128xi32>
    %60 = arith.cmpi sge, %29, %59 : vector<8x128xi32>
    %c32_i32_20 = arith.constant 32 : i32
    %61 = vector.broadcast %c32_i32_20 : i32 to vector<8x128xi32>
    %62 = arith.cmpi slt, %29, %61 : vector<8x128xi32>
    %63 = arith.andi %60, %62 : vector<8x128xi1>
    %cst_21 = arith.constant 0.000000e+00 : f32
    %64 = vector.broadcast %cst_21 : f32 to vector<8x128xf32>
    %65 = arith.select %63, %47, %64 : vector<8x128xi1>, vector<8x128xf32>
    %66 = tpu.concatenate %58, %65 in 0 : vector<8x128xf32>, vector<8x128xf32> -> vector<16x128xf32>
    %67 = arith.truncf %66 : vector<16x128xf32> to vector<16x128xbf16>
    %c0_i32_22 = arith.constant 0 : i32
    %68 = vector.broadcast %c0_i32_22 : i32 to vector<8x128xi32>
    %69 = arith.cmpi sge, %29, %68 : vector<8x128xi32>
    %c16_i32_23 = arith.constant 16 : i32
    %70 = vector.broadcast %c16_i32_23 : i32 to vector<8x128xi32>
    %71 = arith.cmpi slt, %29, %70 : vector<8x128xi32>
    %72 = arith.andi %69, %71 : vector<8x128xi1>
    %cst_24 = arith.constant 0.000000e+00 : f32
    %73 = vector.broadcast %cst_24 : f32 to vector<8x128xf32>
    %74 = arith.select %72, %51, %73 : vector<8x128xi1>, vector<8x128xf32>
    %c16_i32_25 = arith.constant 16 : i32
    %75 = vector.broadcast %c16_i32_25 : i32 to vector<8x128xi32>
    %76 = arith.cmpi sge, %29, %75 : vector<8x128xi32>
    %c32_i32_26 = arith.constant 32 : i32
    %77 = vector.broadcast %c32_i32_26 : i32 to vector<8x128xi32>
    %78 = arith.cmpi slt, %29, %77 : vector<8x128xi32>
    %79 = arith.andi %76, %78 : vector<8x128xi1>
    %cst_27 = arith.constant 0.000000e+00 : f32
    %80 = vector.broadcast %cst_27 : f32 to vector<8x128xf32>
    %81 = arith.select %79, %51, %80 : vector<8x128xi1>, vector<8x128xf32>
    %82 = tpu.concatenate %74, %81 in 0 : vector<8x128xf32>, vector<8x128xf32> -> vector<16x128xf32>
    %83 = arith.truncf %82 : vector<16x128xf32> to vector<16x128xbf16>
    %84 = arith.truncf %43 : vector<8x128xf32> to vector<8x128xbf16>
    %cst_28 = arith.constant dense<0.000000e+00> : vector<8x16xf32>
    %85 = tpu.matmul %84, %67, %cst_28 {dimension_numbers = #tpu.dot_dimension_numbers<[1], [1], [0], [0], [0, 0, 1, 0], [], []>} : vector<8x128xbf16>, vector<16x128xbf16>, vector<8x16xf32> -> vector<8x16xf32>
    %86 = tpu.iota {dimensions = array<i32: 1>} : vector<8x16xi32>
    %cst_29 = arith.constant 0.000000e+00 : f32
    %87 = vector.broadcast %cst_29 : f32 to vector<8x16xf32>
    %c0_i32_30 = arith.constant 0 : i32
    %88 = vector.broadcast %c0_i32_30 : i32 to vector<8x16xi32>
    %89 = arith.cmpi sge, %86, %88 : vector<8x16xi32>
    %c8_i32 = arith.constant 8 : i32
    %90 = vector.broadcast %c8_i32 : i32 to vector<8x16xi32>
    %91 = arith.cmpi slt, %86, %90 : vector<8x16xi32>
    %92 = arith.andi %89, %91 : vector<8x16xi1>
    %cst_31 = arith.constant -1.000000e+30 : f32
    %93 = vector.broadcast %cst_31 : f32 to vector<8x16xf32>
    %94 = arith.select %92, %85, %93 : vector<8x16xi1>, vector<8x16xf32>
    %cst_32 = arith.constant dense<0xFF800000> : vector<8xf32>
    %95 = vector.multi_reduction <maximumf>, %94, %cst_32 [1] : vector<8x16xf32> to vector<8xf32>
    %96 = vector.shape_cast %95 : vector<8xf32> to vector<8x1xf32>
    %97 = vector.broadcast %96 : vector<8x1xf32> to vector<8x16xf32>
    %98 = arith.subf %85, %97 : vector<8x16xf32>
    %99 = math.exp %98 : vector<8x16xf32>
    %cst_33 = arith.constant 0.000000e+00 : f32
    %100 = vector.broadcast %cst_33 : f32 to vector<8x16xf32>
    %101 = arith.select %92, %99, %100 : vector<8x16xi1>, vector<8x16xf32>
    %cst_34 = arith.constant dense<0.000000e+00> : vector<8xf32>
    %102 = vector.multi_reduction <add>, %101, %cst_34 [1] : vector<8x16xf32> to vector<8xf32>
    %103 = vector.shape_cast %102 : vector<8xf32> to vector<8x1xf32>
    %104 = tpu.reciprocal %103 {approx = true} : vector<8x1xf32> -> vector<8x1xf32>
    %105 = vector.broadcast %104 : vector<8x1xf32> to vector<8x16xf32>
    %106 = arith.mulf %101, %105 : vector<8x16xf32>
    %107 = arith.addf %87, %106 : vector<8x16xf32>
    %c8_i32_35 = arith.constant 8 : i32
    %108 = vector.broadcast %c8_i32_35 : i32 to vector<8x16xi32>
    %109 = arith.cmpi sge, %86, %108 : vector<8x16xi32>
    %c16_i32_36 = arith.constant 16 : i32
    %110 = vector.broadcast %c16_i32_36 : i32 to vector<8x16xi32>
    %111 = arith.cmpi slt, %86, %110 : vector<8x16xi32>
    %112 = arith.andi %109, %111 : vector<8x16xi1>
    %cst_37 = arith.constant -1.000000e+30 : f32
    %113 = vector.broadcast %cst_37 : f32 to vector<8x16xf32>
    %114 = arith.select %112, %85, %113 : vector<8x16xi1>, vector<8x16xf32>
    %cst_38 = arith.constant dense<0xFF800000> : vector<8xf32>
    %115 = vector.multi_reduction <maximumf>, %114, %cst_38 [1] : vector<8x16xf32> to vector<8xf32>
    %116 = vector.shape_cast %115 : vector<8xf32> to vector<8x1xf32>
    %117 = vector.broadcast %116 : vector<8x1xf32> to vector<8x16xf32>
    %118 = arith.subf %85, %117 : vector<8x16xf32>
    %119 = math.exp %118 : vector<8x16xf32>
    %cst_39 = arith.constant 0.000000e+00 : f32
    %120 = vector.broadcast %cst_39 : f32 to vector<8x16xf32>
    %121 = arith.select %112, %119, %120 : vector<8x16xi1>, vector<8x16xf32>
    %cst_40 = arith.constant dense<0.000000e+00> : vector<8xf32>
    %122 = vector.multi_reduction <add>, %121, %cst_40 [1] : vector<8x16xf32> to vector<8xf32>
    %123 = vector.shape_cast %122 : vector<8xf32> to vector<8x1xf32>
    %124 = tpu.reciprocal %123 {approx = true} : vector<8x1xf32> -> vector<8x1xf32>
    %125 = vector.broadcast %124 : vector<8x1xf32> to vector<8x16xf32>
    %126 = arith.mulf %121, %125 : vector<8x16xf32>
    %127 = arith.addf %107, %126 : vector<8x16xf32>
    %128 = arith.truncf %127 : vector<8x16xf32> to vector<8x16xbf16>
    %cst_41 = arith.constant dense<0.000000e+00> : vector<8x128xf32>
    %129 = tpu.matmul %128, %83, %cst_41 {dimension_numbers = #tpu.dot_dimension_numbers<[1], [0], [0], [1], [0, 0, 1, 1], [], []>} : vector<8x16xbf16>, vector<16x128xbf16>, vector<8x128xf32> -> vector<8x128xf32>
    %130 = arith.truncf %129 : vector<8x128xf32> to vector<8x128xbf16>
    %cst_42 = arith.constant dense<0.000000e+00> : vector<8x128xf32>
    %131 = tpu.matmul %130, %33, %cst_42 {dimension_numbers = #tpu.dot_dimension_numbers<[1], [0], [0], [1], [0, 0, 1, 1], [], []>} : vector<8x128xbf16>, vector<128x128xbf16>, vector<8x128xf32> -> vector<8x128xf32>
    %132 = vector.extract_strided_slice %0 {offsets = [5, 0], sizes = [1, 128], strides = [1, 1]} : vector<24x128xf32> to vector<1x128xf32>
    %133 = vector.broadcast %132 : vector<1x128xf32> to vector<8x128xf32>
    %134 = arith.addf %131, %133 : vector<8x128xf32>
    %135 = arith.addf %134, %28 : vector<8x128xf32>
    %136 = vector.extract_strided_slice %0 {offsets = [6, 0], sizes = [1, 128], strides = [1, 1]} : vector<24x128xf32> to vector<1x128xf32>
    %137 = vector.extract_strided_slice %0 {offsets = [7, 0], sizes = [1, 128], strides = [1, 1]} : vector<24x128xf32> to vector<1x128xf32>
    %138 = tpu.iota {dimensions = array<i32: 1>} : vector<8x128xi32>
    %c32_i32_43 = arith.constant 32 : i32
    %139 = vector.broadcast %c32_i32_43 : i32 to vector<8x128xi32>
    %140 = arith.cmpi slt, %138, %139 : vector<8x128xi32>
    %cst_44 = arith.constant dense<0.000000e+00> : vector<8xf32>
    %141 = vector.multi_reduction <add>, %135, %cst_44 [1] : vector<8x128xf32> to vector<8xf32>
    %142 = vector.shape_cast %141 : vector<8xf32> to vector<8x1xf32>
    %cst_45 = arith.constant 3.125000e-02 : f32
    %143 = vector.broadcast %cst_45 : f32 to vector<8x1xf32>
    %144 = arith.mulf %142, %143 : vector<8x1xf32>
    %145 = vector.broadcast %144 : vector<8x1xf32> to vector<8x128xf32>
    %146 = arith.subf %135, %145 : vector<8x128xf32>
    %147 = arith.mulf %146, %146 : vector<8x128xf32>
    %cst_46 = arith.constant 0.000000e+00 : f32
    %148 = vector.broadcast %cst_46 : f32 to vector<8x128xf32>
    %149 = arith.select %140, %147, %148 : vector<8x128xi1>, vector<8x128xf32>
    %cst_47 = arith.constant dense<0.000000e+00> : vector<8xf32>
    %150 = vector.multi_reduction <add>, %149, %cst_47 [1] : vector<8x128xf32> to vector<8xf32>
    %151 = vector.shape_cast %150 : vector<8xf32> to vector<8x1xf32>
    %cst_48 = arith.constant 3.125000e-02 : f32
    %152 = vector.broadcast %cst_48 : f32 to vector<8x1xf32>
    %153 = arith.mulf %151, %152 : vector<8x1xf32>
    %cst_49 = arith.constant 9.99999996E-13 : f32
    %154 = vector.broadcast %cst_49 : f32 to vector<8x1xf32>
    %155 = arith.addf %153, %154 : vector<8x1xf32>
    %156 = math.rsqrt %155 : vector<8x1xf32>
    %157 = vector.broadcast %156 : vector<8x1xf32> to vector<8x128xf32>
    %158 = arith.mulf %146, %157 : vector<8x128xf32>
    %159 = vector.broadcast %136 : vector<1x128xf32> to vector<8x128xf32>
    %160 = arith.mulf %158, %159 : vector<8x128xf32>
    %161 = vector.broadcast %137 : vector<1x128xf32> to vector<8x128xf32>
    %162 = arith.addf %160, %161 : vector<8x128xf32>
    %163 = arith.truncf %162 : vector<8x128xf32> to vector<8x128xbf16>
    %cst_50 = arith.constant dense<0.000000e+00> : vector<8x128xf32>
    %164 = tpu.matmul %163, %35, %cst_50 {dimension_numbers = #tpu.dot_dimension_numbers<[1], [0], [0], [1], [0, 0, 1, 1], [], []>} : vector<8x128xbf16>, vector<128x128xbf16>, vector<8x128xf32> -> vector<8x128xf32>
    %165 = vector.extract_strided_slice %0 {offsets = [8, 0], sizes = [1, 128], strides = [1, 1]} : vector<24x128xf32> to vector<1x128xf32>
    %166 = vector.broadcast %165 : vector<1x128xf32> to vector<8x128xf32>
    %167 = arith.addf %164, %166 : vector<8x128xf32>
    %cst_51 = arith.constant 5.000000e-01 : f32
    %168 = vector.broadcast %cst_51 : f32 to vector<8x128xf32>
    %169 = arith.mulf %168, %167 : vector<8x128xf32>
    %cst_52 = arith.constant 4.471500e-02 : f32
    %170 = vector.broadcast %cst_52 : f32 to vector<8x128xf32>
    %171 = arith.mulf %170, %167 : vector<8x128xf32>
    %172 = arith.mulf %171, %167 : vector<8x128xf32>
    %173 = arith.mulf %172, %167 : vector<8x128xf32>
    %174 = arith.addf %167, %173 : vector<8x128xf32>
    %cst_53 = arith.constant 0.797884583 : f32
    %175 = vector.broadcast %cst_53 : f32 to vector<8x128xf32>
    %176 = arith.mulf %175, %174 : vector<8x128xf32>
    %177 = math.tanh %176 : vector<8x128xf32>
    %cst_54 = arith.constant 1.000000e+00 : f32
    %178 = vector.broadcast %cst_54 : f32 to vector<8x128xf32>
    %179 = arith.addf %178, %177 : vector<8x128xf32>
    %180 = arith.mulf %169, %179 : vector<8x128xf32>
    %181 = arith.truncf %180 : vector<8x128xf32> to vector<8x128xbf16>
    %cst_55 = arith.constant dense<0.000000e+00> : vector<8x128xf32>
    %182 = tpu.matmul %181, %37, %cst_55 {dimension_numbers = #tpu.dot_dimension_numbers<[1], [0], [0], [1], [0, 0, 1, 1], [], []>} : vector<8x128xbf16>, vector<128x128xbf16>, vector<8x128xf32> -> vector<8x128xf32>
    %183 = vector.extract_strided_slice %0 {offsets = [9, 0], sizes = [1, 128], strides = [1, 1]} : vector<24x128xf32> to vector<1x128xf32>
    %184 = vector.broadcast %183 : vector<1x128xf32> to vector<8x128xf32>
    %185 = arith.addf %182, %184 : vector<8x128xf32>
    %186 = arith.addf %185, %162 : vector<8x128xf32>
    %187 = vector.extract_strided_slice %0 {offsets = [10, 0], sizes = [1, 128], strides = [1, 1]} : vector<24x128xf32> to vector<1x128xf32>
    %188 = vector.extract_strided_slice %0 {offsets = [11, 0], sizes = [1, 128], strides = [1, 1]} : vector<24x128xf32> to vector<1x128xf32>
    %189 = tpu.iota {dimensions = array<i32: 1>} : vector<8x128xi32>
    %c32_i32_56 = arith.constant 32 : i32
    %190 = vector.broadcast %c32_i32_56 : i32 to vector<8x128xi32>
    %191 = arith.cmpi slt, %189, %190 : vector<8x128xi32>
    %cst_57 = arith.constant dense<0.000000e+00> : vector<8xf32>
    %192 = vector.multi_reduction <add>, %186, %cst_57 [1] : vector<8x128xf32> to vector<8xf32>
    %193 = vector.shape_cast %192 : vector<8xf32> to vector<8x1xf32>
    %cst_58 = arith.constant 3.125000e-02 : f32
    %194 = vector.broadcast %cst_58 : f32 to vector<8x1xf32>
    %195 = arith.mulf %193, %194 : vector<8x1xf32>
    %196 = vector.broadcast %195 : vector<8x1xf32> to vector<8x128xf32>
    %197 = arith.subf %186, %196 : vector<8x128xf32>
    %198 = arith.mulf %197, %197 : vector<8x128xf32>
    %cst_59 = arith.constant 0.000000e+00 : f32
    %199 = vector.broadcast %cst_59 : f32 to vector<8x128xf32>
    %200 = arith.select %191, %198, %199 : vector<8x128xi1>, vector<8x128xf32>
    %cst_60 = arith.constant dense<0.000000e+00> : vector<8xf32>
    %201 = vector.multi_reduction <add>, %200, %cst_60 [1] : vector<8x128xf32> to vector<8xf32>
    %202 = vector.shape_cast %201 : vector<8xf32> to vector<8x1xf32>
    %cst_61 = arith.constant 3.125000e-02 : f32
    %203 = vector.broadcast %cst_61 : f32 to vector<8x1xf32>
    %204 = arith.mulf %202, %203 : vector<8x1xf32>
    %cst_62 = arith.constant 9.99999996E-13 : f32
    %205 = vector.broadcast %cst_62 : f32 to vector<8x1xf32>
    %206 = arith.addf %204, %205 : vector<8x1xf32>
    %207 = math.rsqrt %206 : vector<8x1xf32>
    %208 = vector.broadcast %207 : vector<8x1xf32> to vector<8x128xf32>
    %209 = arith.mulf %197, %208 : vector<8x128xf32>
    %210 = vector.broadcast %187 : vector<1x128xf32> to vector<8x128xf32>
    %211 = arith.mulf %209, %210 : vector<8x128xf32>
    %212 = vector.broadcast %188 : vector<1x128xf32> to vector<8x128xf32>
    %213 = arith.addf %211, %212 : vector<8x128xf32>
    %c1 = arith.constant 1 : index
    %c0_63 = arith.constant 0 : index
    %c0_64 = arith.constant 0 : index
    %214 = vector.load %arg2[%c1, %c0_63, %c0_64] : memref<2x128x768xbf16, #tpu.memory_space<vmem>>, vector<1x128x384xbf16>
    %215 = vector.shape_cast %214 : vector<1x128x384xbf16> to vector<128x384xbf16>
    %c1_65 = arith.constant 1 : index
    %c0_66 = arith.constant 0 : index
    %c384_67 = arith.constant 384 : index
    %216 = vector.load %arg2[%c1_65, %c0_66, %c384_67] : memref<2x128x768xbf16, #tpu.memory_space<vmem>>, vector<1x128x128xbf16>
    %217 = vector.shape_cast %216 : vector<1x128x128xbf16> to vector<128x128xbf16>
    %c1_68 = arith.constant 1 : index
    %c0_69 = arith.constant 0 : index
    %c512_70 = arith.constant 512 : index
    %218 = vector.load %arg2[%c1_68, %c0_69, %c512_70] : memref<2x128x768xbf16, #tpu.memory_space<vmem>>, vector<1x128x128xbf16>
    %219 = vector.shape_cast %218 : vector<1x128x128xbf16> to vector<128x128xbf16>
    %c1_71 = arith.constant 1 : index
    %c0_72 = arith.constant 0 : index
    %c640_73 = arith.constant 640 : index
    %220 = vector.load %arg2[%c1_71, %c0_72, %c640_73] : memref<2x128x768xbf16, #tpu.memory_space<vmem>>, vector<1x128x128xbf16>
    %221 = vector.shape_cast %220 : vector<1x128x128xbf16> to vector<128x128xbf16>
    %222 = arith.truncf %213 : vector<8x128xf32> to vector<8x128xbf16>
    %cst_74 = arith.constant dense<0.000000e+00> : vector<8x384xf32>
    %223 = tpu.matmul %222, %215, %cst_74 {dimension_numbers = #tpu.dot_dimension_numbers<[1], [0], [0], [1], [0, 0, 1, 1], [], []>} : vector<8x128xbf16>, vector<128x384xbf16>, vector<8x384xf32> -> vector<8x384xf32>
    %224 = vector.extract_strided_slice %223 {offsets = [0, 0], sizes = [8, 128], strides = [1, 1]} : vector<8x384xf32> to vector<8x128xf32>
    %225 = vector.extract_strided_slice %0 {offsets = [12, 0], sizes = [1, 128], strides = [1, 1]} : vector<24x128xf32> to vector<1x128xf32>
    %226 = vector.broadcast %225 : vector<1x128xf32> to vector<8x128xf32>
    %227 = arith.addf %224, %226 : vector<8x128xf32>
    %228 = vector.extract_strided_slice %223 {offsets = [0, 128], sizes = [8, 128], strides = [1, 1]} : vector<8x384xf32> to vector<8x128xf32>
    %229 = vector.extract_strided_slice %0 {offsets = [13, 0], sizes = [1, 128], strides = [1, 1]} : vector<24x128xf32> to vector<1x128xf32>
    %230 = vector.broadcast %229 : vector<1x128xf32> to vector<8x128xf32>
    %231 = arith.addf %228, %230 : vector<8x128xf32>
    %232 = vector.extract_strided_slice %223 {offsets = [0, 256], sizes = [8, 128], strides = [1, 1]} : vector<8x384xf32> to vector<8x128xf32>
    %233 = vector.extract_strided_slice %0 {offsets = [14, 0], sizes = [1, 128], strides = [1, 1]} : vector<24x128xf32> to vector<1x128xf32>
    %234 = vector.broadcast %233 : vector<1x128xf32> to vector<8x128xf32>
    %235 = arith.addf %232, %234 : vector<8x128xf32>
    %c0_i32_75 = arith.constant 0 : i32
    %236 = vector.broadcast %c0_i32_75 : i32 to vector<8x128xi32>
    %237 = arith.cmpi sge, %29, %236 : vector<8x128xi32>
    %c16_i32_76 = arith.constant 16 : i32
    %238 = vector.broadcast %c16_i32_76 : i32 to vector<8x128xi32>
    %239 = arith.cmpi slt, %29, %238 : vector<8x128xi32>
    %240 = arith.andi %237, %239 : vector<8x128xi1>
    %cst_77 = arith.constant 0.000000e+00 : f32
    %241 = vector.broadcast %cst_77 : f32 to vector<8x128xf32>
    %242 = arith.select %240, %231, %241 : vector<8x128xi1>, vector<8x128xf32>
    %c16_i32_78 = arith.constant 16 : i32
    %243 = vector.broadcast %c16_i32_78 : i32 to vector<8x128xi32>
    %244 = arith.cmpi sge, %29, %243 : vector<8x128xi32>
    %c32_i32_79 = arith.constant 32 : i32
    %245 = vector.broadcast %c32_i32_79 : i32 to vector<8x128xi32>
    %246 = arith.cmpi slt, %29, %245 : vector<8x128xi32>
    %247 = arith.andi %244, %246 : vector<8x128xi1>
    %cst_80 = arith.constant 0.000000e+00 : f32
    %248 = vector.broadcast %cst_80 : f32 to vector<8x128xf32>
    %249 = arith.select %247, %231, %248 : vector<8x128xi1>, vector<8x128xf32>
    %250 = tpu.concatenate %242, %249 in 0 : vector<8x128xf32>, vector<8x128xf32> -> vector<16x128xf32>
    %251 = arith.truncf %250 : vector<16x128xf32> to vector<16x128xbf16>
    %c0_i32_81 = arith.constant 0 : i32
    %252 = vector.broadcast %c0_i32_81 : i32 to vector<8x128xi32>
    %253 = arith.cmpi sge, %29, %252 : vector<8x128xi32>
    %c16_i32_82 = arith.constant 16 : i32
    %254 = vector.broadcast %c16_i32_82 : i32 to vector<8x128xi32>
    %255 = arith.cmpi slt, %29, %254 : vector<8x128xi32>
    %256 = arith.andi %253, %255 : vector<8x128xi1>
    %cst_83 = arith.constant 0.000000e+00 : f32
    %257 = vector.broadcast %cst_83 : f32 to vector<8x128xf32>
    %258 = arith.select %256, %235, %257 : vector<8x128xi1>, vector<8x128xf32>
    %c16_i32_84 = arith.constant 16 : i32
    %259 = vector.broadcast %c16_i32_84 : i32 to vector<8x128xi32>
    %260 = arith.cmpi sge, %29, %259 : vector<8x128xi32>
    %c32_i32_85 = arith.constant 32 : i32
    %261 = vector.broadcast %c32_i32_85 : i32 to vector<8x128xi32>
    %262 = arith.cmpi slt, %29, %261 : vector<8x128xi32>
    %263 = arith.andi %260, %262 : vector<8x128xi1>
    %cst_86 = arith.constant 0.000000e+00 : f32
    %264 = vector.broadcast %cst_86 : f32 to vector<8x128xf32>
    %265 = arith.select %263, %235, %264 : vector<8x128xi1>, vector<8x128xf32>
    %266 = tpu.concatenate %258, %265 in 0 : vector<8x128xf32>, vector<8x128xf32> -> vector<16x128xf32>
    %267 = arith.truncf %266 : vector<16x128xf32> to vector<16x128xbf16>
    %268 = arith.truncf %227 : vector<8x128xf32> to vector<8x128xbf16>
    %cst_87 = arith.constant dense<0.000000e+00> : vector<8x16xf32>
    %269 = tpu.matmul %268, %251, %cst_87 {dimension_numbers = #tpu.dot_dimension_numbers<[1], [1], [0], [0], [0, 0, 1, 0], [], []>} : vector<8x128xbf16>, vector<16x128xbf16>, vector<8x16xf32> -> vector<8x16xf32>
    %270 = tpu.iota {dimensions = array<i32: 1>} : vector<8x16xi32>
    %cst_88 = arith.constant 0.000000e+00 : f32
    %271 = vector.broadcast %cst_88 : f32 to vector<8x16xf32>
    %c0_i32_89 = arith.constant 0 : i32
    %272 = vector.broadcast %c0_i32_89 : i32 to vector<8x16xi32>
    %273 = arith.cmpi sge, %270, %272 : vector<8x16xi32>
    %c8_i32_90 = arith.constant 8 : i32
    %274 = vector.broadcast %c8_i32_90 : i32 to vector<8x16xi32>
    %275 = arith.cmpi slt, %270, %274 : vector<8x16xi32>
    %276 = arith.andi %273, %275 : vector<8x16xi1>
    %cst_91 = arith.constant -1.000000e+30 : f32
    %277 = vector.broadcast %cst_91 : f32 to vector<8x16xf32>
    %278 = arith.select %276, %269, %277 : vector<8x16xi1>, vector<8x16xf32>
    %cst_92 = arith.constant dense<0xFF800000> : vector<8xf32>
    %279 = vector.multi_reduction <maximumf>, %278, %cst_92 [1] : vector<8x16xf32> to vector<8xf32>
    %280 = vector.shape_cast %279 : vector<8xf32> to vector<8x1xf32>
    %281 = vector.broadcast %280 : vector<8x1xf32> to vector<8x16xf32>
    %282 = arith.subf %269, %281 : vector<8x16xf32>
    %283 = math.exp %282 : vector<8x16xf32>
    %cst_93 = arith.constant 0.000000e+00 : f32
    %284 = vector.broadcast %cst_93 : f32 to vector<8x16xf32>
    %285 = arith.select %276, %283, %284 : vector<8x16xi1>, vector<8x16xf32>
    %cst_94 = arith.constant dense<0.000000e+00> : vector<8xf32>
    %286 = vector.multi_reduction <add>, %285, %cst_94 [1] : vector<8x16xf32> to vector<8xf32>
    %287 = vector.shape_cast %286 : vector<8xf32> to vector<8x1xf32>
    %288 = tpu.reciprocal %287 {approx = true} : vector<8x1xf32> -> vector<8x1xf32>
    %289 = vector.broadcast %288 : vector<8x1xf32> to vector<8x16xf32>
    %290 = arith.mulf %285, %289 : vector<8x16xf32>
    %291 = arith.addf %271, %290 : vector<8x16xf32>
    %c8_i32_95 = arith.constant 8 : i32
    %292 = vector.broadcast %c8_i32_95 : i32 to vector<8x16xi32>
    %293 = arith.cmpi sge, %270, %292 : vector<8x16xi32>
    %c16_i32_96 = arith.constant 16 : i32
    %294 = vector.broadcast %c16_i32_96 : i32 to vector<8x16xi32>
    %295 = arith.cmpi slt, %270, %294 : vector<8x16xi32>
    %296 = arith.andi %293, %295 : vector<8x16xi1>
    %cst_97 = arith.constant -1.000000e+30 : f32
    %297 = vector.broadcast %cst_97 : f32 to vector<8x16xf32>
    %298 = arith.select %296, %269, %297 : vector<8x16xi1>, vector<8x16xf32>
    %cst_98 = arith.constant dense<0xFF800000> : vector<8xf32>
    %299 = vector.multi_reduction <maximumf>, %298, %cst_98 [1] : vector<8x16xf32> to vector<8xf32>
    %300 = vector.shape_cast %299 : vector<8xf32> to vector<8x1xf32>
    %301 = vector.broadcast %300 : vector<8x1xf32> to vector<8x16xf32>
    %302 = arith.subf %269, %301 : vector<8x16xf32>
    %303 = math.exp %302 : vector<8x16xf32>
    %cst_99 = arith.constant 0.000000e+00 : f32
    %304 = vector.broadcast %cst_99 : f32 to vector<8x16xf32>
    %305 = arith.select %296, %303, %304 : vector<8x16xi1>, vector<8x16xf32>
    %cst_100 = arith.constant dense<0.000000e+00> : vector<8xf32>
    %306 = vector.multi_reduction <add>, %305, %cst_100 [1] : vector<8x16xf32> to vector<8xf32>
    %307 = vector.shape_cast %306 : vector<8xf32> to vector<8x1xf32>
    %308 = tpu.reciprocal %307 {approx = true} : vector<8x1xf32> -> vector<8x1xf32>
    %309 = vector.broadcast %308 : vector<8x1xf32> to vector<8x16xf32>
    %310 = arith.mulf %305, %309 : vector<8x16xf32>
    %311 = arith.addf %291, %310 : vector<8x16xf32>
    %312 = arith.truncf %311 : vector<8x16xf32> to vector<8x16xbf16>
    %cst_101 = arith.constant dense<0.000000e+00> : vector<8x128xf32>
    %313 = tpu.matmul %312, %267, %cst_101 {dimension_numbers = #tpu.dot_dimension_numbers<[1], [0], [0], [1], [0, 0, 1, 1], [], []>} : vector<8x16xbf16>, vector<16x128xbf16>, vector<8x128xf32> -> vector<8x128xf32>
    %314 = arith.truncf %313 : vector<8x128xf32> to vector<8x128xbf16>
    %cst_102 = arith.constant dense<0.000000e+00> : vector<8x128xf32>
    %315 = tpu.matmul %314, %217, %cst_102 {dimension_numbers = #tpu.dot_dimension_numbers<[1], [0], [0], [1], [0, 0, 1, 1], [], []>} : vector<8x128xbf16>, vector<128x128xbf16>, vector<8x128xf32> -> vector<8x128xf32>
    %316 = vector.extract_strided_slice %0 {offsets = [15, 0], sizes = [1, 128], strides = [1, 1]} : vector<24x128xf32> to vector<1x128xf32>
    %317 = vector.broadcast %316 : vector<1x128xf32> to vector<8x128xf32>
    %318 = arith.addf %315, %317 : vector<8x128xf32>
    %319 = arith.addf %318, %213 : vector<8x128xf32>
    %320 = vector.extract_strided_slice %0 {offsets = [16, 0], sizes = [1, 128], strides = [1, 1]} : vector<24x128xf32> to vector<1x128xf32>
    %321 = vector.extract_strided_slice %0 {offsets = [17, 0], sizes = [1, 128], strides = [1, 1]} : vector<24x128xf32> to vector<1x128xf32>
    %322 = tpu.iota {dimensions = array<i32: 1>} : vector<8x128xi32>
    %c32_i32_103 = arith.constant 32 : i32
    %323 = vector.broadcast %c32_i32_103 : i32 to vector<8x128xi32>
    %324 = arith.cmpi slt, %322, %323 : vector<8x128xi32>
    %cst_104 = arith.constant dense<0.000000e+00> : vector<8xf32>
    %325 = vector.multi_reduction <add>, %319, %cst_104 [1] : vector<8x128xf32> to vector<8xf32>
    %326 = vector.shape_cast %325 : vector<8xf32> to vector<8x1xf32>
    %cst_105 = arith.constant 3.125000e-02 : f32
    %327 = vector.broadcast %cst_105 : f32 to vector<8x1xf32>
    %328 = arith.mulf %326, %327 : vector<8x1xf32>
    %329 = vector.broadcast %328 : vector<8x1xf32> to vector<8x128xf32>
    %330 = arith.subf %319, %329 : vector<8x128xf32>
    %331 = arith.mulf %330, %330 : vector<8x128xf32>
    %cst_106 = arith.constant 0.000000e+00 : f32
    %332 = vector.broadcast %cst_106 : f32 to vector<8x128xf32>
    %333 = arith.select %324, %331, %332 : vector<8x128xi1>, vector<8x128xf32>
    %cst_107 = arith.constant dense<0.000000e+00> : vector<8xf32>
    %334 = vector.multi_reduction <add>, %333, %cst_107 [1] : vector<8x128xf32> to vector<8xf32>
    %335 = vector.shape_cast %334 : vector<8xf32> to vector<8x1xf32>
    %cst_108 = arith.constant 3.125000e-02 : f32
    %336 = vector.broadcast %cst_108 : f32 to vector<8x1xf32>
    %337 = arith.mulf %335, %336 : vector<8x1xf32>
    %cst_109 = arith.constant 9.99999996E-13 : f32
    %338 = vector.broadcast %cst_109 : f32 to vector<8x1xf32>
    %339 = arith.addf %337, %338 : vector<8x1xf32>
    %340 = math.rsqrt %339 : vector<8x1xf32>
    %341 = vector.broadcast %340 : vector<8x1xf32> to vector<8x128xf32>
    %342 = arith.mulf %330, %341 : vector<8x128xf32>
    %343 = vector.broadcast %320 : vector<1x128xf32> to vector<8x128xf32>
    %344 = arith.mulf %342, %343 : vector<8x128xf32>
    %345 = vector.broadcast %321 : vector<1x128xf32> to vector<8x128xf32>
    %346 = arith.addf %344, %345 : vector<8x128xf32>
    %347 = arith.truncf %346 : vector<8x128xf32> to vector<8x128xbf16>
    %cst_110 = arith.constant dense<0.000000e+00> : vector<8x128xf32>
    %348 = tpu.matmul %347, %219, %cst_110 {dimension_numbers = #tpu.dot_dimension_numbers<[1], [0], [0], [1], [0, 0, 1, 1], [], []>} : vector<8x128xbf16>, vector<128x128xbf16>, vector<8x128xf32> -> vector<8x128xf32>
    %349 = vector.extract_strided_slice %0 {offsets = [18, 0], sizes = [1, 128], strides = [1, 1]} : vector<24x128xf32> to vector<1x128xf32>
    %350 = vector.broadcast %349 : vector<1x128xf32> to vector<8x128xf32>
    %351 = arith.addf %348, %350 : vector<8x128xf32>
    %cst_111 = arith.constant 5.000000e-01 : f32
    %352 = vector.broadcast %cst_111 : f32 to vector<8x128xf32>
    %353 = arith.mulf %352, %351 : vector<8x128xf32>
    %cst_112 = arith.constant 4.471500e-02 : f32
    %354 = vector.broadcast %cst_112 : f32 to vector<8x128xf32>
    %355 = arith.mulf %354, %351 : vector<8x128xf32>
    %356 = arith.mulf %355, %351 : vector<8x128xf32>
    %357 = arith.mulf %356, %351 : vector<8x128xf32>
    %358 = arith.addf %351, %357 : vector<8x128xf32>
    %cst_113 = arith.constant 0.797884583 : f32
    %359 = vector.broadcast %cst_113 : f32 to vector<8x128xf32>
    %360 = arith.mulf %359, %358 : vector<8x128xf32>
    %361 = math.tanh %360 : vector<8x128xf32>
    %cst_114 = arith.constant 1.000000e+00 : f32
    %362 = vector.broadcast %cst_114 : f32 to vector<8x128xf32>
    %363 = arith.addf %362, %361 : vector<8x128xf32>
    %364 = arith.mulf %353, %363 : vector<8x128xf32>
    %365 = arith.truncf %364 : vector<8x128xf32> to vector<8x128xbf16>
    %cst_115 = arith.constant dense<0.000000e+00> : vector<8x128xf32>
    %366 = tpu.matmul %365, %221, %cst_115 {dimension_numbers = #tpu.dot_dimension_numbers<[1], [0], [0], [1], [0, 0, 1, 1], [], []>} : vector<8x128xbf16>, vector<128x128xbf16>, vector<8x128xf32> -> vector<8x128xf32>
    %367 = vector.extract_strided_slice %0 {offsets = [19, 0], sizes = [1, 128], strides = [1, 1]} : vector<24x128xf32> to vector<1x128xf32>
    %368 = vector.broadcast %367 : vector<1x128xf32> to vector<8x128xf32>
    %369 = arith.addf %366, %368 : vector<8x128xf32>
    %370 = arith.addf %369, %346 : vector<8x128xf32>
    %371 = vector.extract_strided_slice %0 {offsets = [20, 0], sizes = [1, 128], strides = [1, 1]} : vector<24x128xf32> to vector<1x128xf32>
    %372 = vector.extract_strided_slice %0 {offsets = [21, 0], sizes = [1, 128], strides = [1, 1]} : vector<24x128xf32> to vector<1x128xf32>
    %373 = tpu.iota {dimensions = array<i32: 1>} : vector<8x128xi32>
    %c32_i32_116 = arith.constant 32 : i32
    %374 = vector.broadcast %c32_i32_116 : i32 to vector<8x128xi32>
    %375 = arith.cmpi slt, %373, %374 : vector<8x128xi32>
    %cst_117 = arith.constant dense<0.000000e+00> : vector<8xf32>
    %376 = vector.multi_reduction <add>, %370, %cst_117 [1] : vector<8x128xf32> to vector<8xf32>
    %377 = vector.shape_cast %376 : vector<8xf32> to vector<8x1xf32>
    %cst_118 = arith.constant 3.125000e-02 : f32
    %378 = vector.broadcast %cst_118 : f32 to vector<8x1xf32>
    %379 = arith.mulf %377, %378 : vector<8x1xf32>
    %380 = vector.broadcast %379 : vector<8x1xf32> to vector<8x128xf32>
    %381 = arith.subf %370, %380 : vector<8x128xf32>
    %382 = arith.mulf %381, %381 : vector<8x128xf32>
    %cst_119 = arith.constant 0.000000e+00 : f32
    %383 = vector.broadcast %cst_119 : f32 to vector<8x128xf32>
    %384 = arith.select %375, %382, %383 : vector<8x128xi1>, vector<8x128xf32>
    %cst_120 = arith.constant dense<0.000000e+00> : vector<8xf32>
    %385 = vector.multi_reduction <add>, %384, %cst_120 [1] : vector<8x128xf32> to vector<8xf32>
    %386 = vector.shape_cast %385 : vector<8xf32> to vector<8x1xf32>
    %cst_121 = arith.constant 3.125000e-02 : f32
    %387 = vector.broadcast %cst_121 : f32 to vector<8x1xf32>
    %388 = arith.mulf %386, %387 : vector<8x1xf32>
    %cst_122 = arith.constant 9.99999996E-13 : f32
    %389 = vector.broadcast %cst_122 : f32 to vector<8x1xf32>
    %390 = arith.addf %388, %389 : vector<8x1xf32>
    %391 = math.rsqrt %390 : vector<8x1xf32>
    %392 = vector.broadcast %391 : vector<8x1xf32> to vector<8x128xf32>
    %393 = arith.mulf %381, %392 : vector<8x128xf32>
    %394 = vector.broadcast %371 : vector<1x128xf32> to vector<8x128xf32>
    %395 = arith.mulf %393, %394 : vector<8x128xf32>
    %396 = vector.broadcast %372 : vector<1x128xf32> to vector<8x128xf32>
    %397 = arith.addf %395, %396 : vector<8x128xf32>
    %c0_123 = arith.constant 0 : index
    %c0_124 = arith.constant 0 : index
    %398 = vector.load %arg4[%c0_123, %c0_124] : memref<8x128xf32, #tpu.memory_space<vmem>>, vector<8x128xf32>
    tpu.vector_store %arg4[%c0_123, %c0_124], %397 {strides = array<i32>} : memref<8x128xf32, #tpu.memory_space<vmem>>, vector<8x128xf32>,
    return
  }
  func.func @transform_0(%arg0: i32) -> (i32, i32) {
    %c0_i32 = arith.constant 0 : i32
    %c0_i32_0 = arith.constant 0 : i32
    return %arg0, %c0_i32 : i32, i32
  }
  func.func @transform_1(%arg0: i32) -> (i32, i32, i32) {
    %c0_i32 = arith.constant 0 : i32
    %c0_i32_0 = arith.constant 0 : i32
    %c0_i32_1 = arith.constant 0 : i32
    %c0_i32_2 = arith.constant 0 : i32
    return %c0_i32, %c0_i32_0, %c0_i32_1 : i32, i32, i32
  }
  func.func @transform_2(%arg0: i32) -> (i32, i32) {
    %c0_i32 = arith.constant 0 : i32
    %c0_i32_0 = arith.constant 0 : i32
    %c0_i32_1 = arith.constant 0 : i32
    return %c0_i32, %c0_i32_0 : i32, i32
  }
  func.func @transform_3(%arg0: i32) -> (i32, i32) {
    %c0_i32 = arith.constant 0 : i32
    %c0_i32_0 = arith.constant 0 : i32
    return %arg0, %c0_i32 : i32, i32
  }
}

</mosaic_0001>

<llo_original>
// kernel: text_encoder_forward.1
$region0: #{text_encoder_forward.1}
  #allocation0 [shape = 'u32[]', space=smem, size = 0x4, offset = 0x4, fixed_abs, tag = 'smem constant byte address 0x4 - core index']
  #allocation1 [shape = 'u32[144,128]{1,0:T(1,128)}', space=vmem, size = 0x12000, scoped, tag = 'internal scratch']
  %s0 = inlined_call_operand.vmem [shape: f32[16,128], index: 0, kind: input, shape index: {}]
  %s1 = inlined_call_operand.hbm [shape: bf16[2,128,768], index: 1, kind: input, shape index: {}]
  %s2 = inlined_call_operand.vmem [shape: f32[24,128], index: 2, kind: input, shape index: {}]
  %s3 = inlined_call_operand.vmem [shape: f32[16,128], index: 3, kind: output, shape index: {}]
  %s4 = sld [smem:[#allocation0]]
  $region49: #{text_encoder_forward.1} parent=0
    _
  %s6 = ssub.s32 1, %s4
  %s7 = scalar_select 0, %s6, %s4
  $region1: #{text_encoder_forward.1} parent=0
    #allocation2 [shape = 'u8[393216]{0}', space=vmem, size = 0x60000, scoped, tag = 'input window, operand 1, single buffered']
    #allocation3 [shape = 's32[2]{0}', space=sflag, size = 0x8, scoped, tag = 'scoped memory for text_encoder_forward.1']
    %8 = vsyncpa [#allocation3], 0
    loop: start=0, step=1, limit=4
    $region2: #{text_encoder_forward.1} parent=1 // loop_pre_header
      _
    $region3: #{text_encoder_forward.1} parent=1 // loop_header
      %s10 = sphi 0, %s14
      %p11 = scmp.ge.s32.totalorder %s10, 4
      %s20 = sphi 0, %s22
      %s23 = sphi 0, %s20
      %s24 = sphi 0, %s23
      %s40 = sphi 0, %s24
      %s44 = sphi 0, %s44
      %s46 = sphi 0, %s44
      %s47 = sphi 0, %s46
      %s61 = sphi 0, %s47
      %s65 = sphi 0, %s65
      %s67 = sphi 0, %s65
      %s68 = sphi 0, %s67
      %s82 = sphi 0, %s68
      %s88 = sphi 0, %s90
      %s91 = sphi 0, %s88
      %s92 = sphi 0, %s91
      %s108 = sphi 0, %s92
    $region4: #{text_encoder_forward.1} parent=1 // loop_header_branch
      %13 = sbr.rel (%p11) target = $region8
    $region5: #{text_encoder_forward.1} parent=1 // loop_body
      %s15 = ssub.s32 %s10, 1
      %s16 = ssub.s32 %s10, 2
      %s17 = sadd.s32 %s10, 1
      %s18 = ssub.s32 %s10, %s17
      %p19 = scmp.eq.s32.totalorder %s18, 0
      %s21 = sadd.s32 %s20, 1
      %s22 = scalar_select %p19, %s20, %s21
      %p25 = pneg %p19
      %p26 = scmp.eq.s32.totalorder %s10, 1
      %p27 = por %p25, %p26
      %p28 = scmp.ne.s32.totalorder %s20, %s23
      %p29 = scmp.eq.s32.totalorder %s10, 0
      %p30 = por %p28, %p29
      %p31 = scmp.ne.s32.totalorder %s20, %s23
      %p32 = scmp.eq.s32.totalorder %s15, 1
      %p33 = por %p31, %p32
      %p34 = scmp.ne.s32.totalorder %s23, %s24
      %p35 = scmp.eq.s32.totalorder %s15, 0
      %p36 = por %p34, %p35
      %p37 = scmp.ne.s32.totalorder %s23, %s24
      %p38 = scmp.eq.s32.totalorder %s16, 1
      %p39 = por %p37, %p38
      %p41 = scmp.ne.s32.totalorder %s24, %s40
      %p42 = scmp.eq.s32.totalorder %s16, 0
      %p43 = por %p41, %p42
      %s45 = sadd.s32 %s44, 1
      %p48 = scmp.eq.s32.totalorder %s10, 1
      %p49 = scmp.ne.s32.totalorder %s44, %s46
      %p50 = scmp.eq.s32.totalorder %s10, 0
      %p51 = por %p49, %p50
      %p52 = scmp.ne.s32.totalorder %s44, %s46
      %p53 = scmp.eq.s32.totalorder %s15, 1
      %p54 = por %p52, %p53
      %p55 = scmp.ne.s32.totalorder %s46, %s47
      %p56 = scmp.eq.s32.totalorder %s15, 0
      %p57 = por %p55, %p56
      %p58 = scmp.ne.s32.totalorder %s46, %s47
      %p59 = scmp.eq.s32.totalorder %s16, 1
      %p60 = por %p58, %p59
      %p62 = scmp.ne.s32.totalorder %s47, %s61
      %p63 = scmp.eq.s32.totalorder %s16, 0
      %p64 = por %p62, %p63
      %s66 = sadd.s32 %s65, 1
      %p69 = scmp.eq.s32.totalorder %s10, 1
      %p70 = scmp.ne.s32.totalorder %s65, %s67
      %p71 = scmp.eq.s32.totalorder %s10, 0
      %p72 = por %p70, %p71
      %p73 = scmp.ne.s32.totalorder %s65, %s67
      %p74 = scmp.eq.s32.totalorder %s15, 1
      %p75 = por %p73, %p74
      %p76 = scmp.ne.s32.totalorder %s67, %s68
      %p77 = scmp.eq.s32.totalorder %s15, 0
      %p78 = por %p76, %p77
      %p79 = scmp.ne.s32.totalorder %s67, %s68
      %p80 = scmp.eq.s32.totalorder %s16, 1
      %p81 = por %p79, %p80
      %p83 = scmp.ne.s32.totalorder %s68, %s82
      %p84 = scmp.eq.s32.totalorder %s16, 0
      %p85 = por %p83, %p84
      %s86 = ssub.s32 %s10, %s17
      %p87 = scmp.eq.s32.totalorder %s86, 0
      %s89 = sadd.s32 %s88, 1
      %s90 = scalar_select %p87, %s88, %s89
      %p93 = pneg %p87
      %p94 = scmp.eq.s32.totalorder %s10, 1
      %p95 = por %p93, %p94
      %p96 = scmp.ne.s32.totalorder %s88, %s91
      %p97 = scmp.eq.s32.totalorder %s10, 0
      %p98 = por %p96, %p97
      %p99 = scmp.ne.s32.totalorder %s88, %s91
      %p100 = scmp.eq.s32.totalorder %s15, 1
      %p101 = por %p99, %p100
      %p102 = scmp.ne.s32.totalorder %s91, %s92
      %p103 = scmp.eq.s32.totalorder %s15, 0
      %p104 = por %p102, %p103
      %p105 = scmp.ne.s32.totalorder %s91, %s92
      %p106 = scmp.eq.s32.totalorder %s16, 1
      %p107 = por %p105, %p106
      %p109 = scmp.ne.s32.totalorder %s92, %s108
      %p110 = scmp.eq.s32.totalorder %s16, 0
      %p111 = por %p109, %p110
      %p112 = scmp.le.s32.totalorder 1, %s10
      %p113 = scmp.lt.s32.totalorder %s10, 3
      %p114 = pnand %p112, %p113
      %p115 = pneg %p114
      // Predicated region
      $region9: #{text_encoder_forward.1} parent=5 // pred_check
        _
      $region10: #{text_encoder_forward.1} parent=5 // pred_check_branch
        %117 = sbr.rel (%p114) target = $region12
      $region11: #{text_encoder_forward.1} parent=5 // pred_region
        %s118 = ssub.s32 %s10, 1
        // Predicated region
        $region13: #{text_encoder_forward.1} parent=11 // pred_check
          %p119 = pneg %p57
        $region14: #{text_encoder_forward.1} parent=11 // pred_check_branch
          %121 = sbr.rel (%p119) target = $region16
        $region15: #{text_encoder_forward.1} parent=11 // pred_region
          %s123 = ssub.s32 12288, 12288
          %124 = vsyncadd [#allocation3], %s123
          %s125 = sshll.u32 [#allocation2], 4
          %s126 = int_to_ptr.vmem [resolvable:$true] %s125
          %131 = dma.hbm_to_vmem [thread:$0]  %s1, 12288, %s126, [#allocation3], 384, 384, 24
        $region16: #{text_encoder_forward.1} parent=11 // pred_fallthru
          _
        // Predicated region
        $region17: #{text_encoder_forward.1} parent=11 // pred_check
          %p132 = pneg %p78
        $region18: #{text_encoder_forward.1} parent=11 // pred_check_branch
          %134 = sbr.rel (%p132) target = $region20
        $region19: #{text_encoder_forward.1} parent=11 // pred_region
          _
        $region20: #{text_encoder_forward.1} parent=11 // pred_fallthru
          _
      $region12: #{text_encoder_forward.1} parent=5 // pred_fallthru
        _
      %p135 = scmp.lt.s32.totalorder %s10, 2
      // Predicated region
      $region21: #{text_encoder_forward.1} parent=5 // pred_check
        %p136 = pneg %p135
      $region22: #{text_encoder_forward.1} parent=5 // pred_check_branch
        %138 = sbr.rel (%p136) target = $region24
      $region23: #{text_encoder_forward.1} parent=5 // pred_region
        // Predicated region
        $region25: #{text_encoder_forward.1} parent=23 // pred_check
          %p139 = pneg %p30
        $region26: #{text_encoder_forward.1} parent=23 // pred_check_branch
          %141 = sbr.rel (%p139) target = $region28
        $region27: #{text_encoder_forward.1} parent=23 // pred_region
          %p142 = scmp.lt.s32.totalorder %s10, 1
          %s143 = scalar_select %p142, %s10, 1
          %s144 = smul.addr %s143, 8
          %s145 = scalar_lea.vmem %s0, %s144
        $region28: #{text_encoder_forward.1} parent=23 // pred_fallthru
          _
      $region24: #{text_encoder_forward.1} parent=5 // pred_fallthru
        _
      %p146 = scmp.le.s32.totalorder 1, %s10
      %p147 = scmp.lt.s32.totalorder %s10, 3
      %p148 = pnand %p146, %p147
      %p149 = pneg %p148
      // Predicated region
      $region29: #{text_encoder_forward.1} parent=5 // pred_check
        _
      $region30: #{text_encoder_forward.1} parent=5 // pred_check_branch
        %151 = sbr.rel (%p148) target = $region32
      $region31: #{text_encoder_forward.1} parent=5 // pred_region
        %s152 = ssub.s32 %s10, 1
        // Predicated region
        $region33: #{text_encoder_forward.1} parent=31 // pred_check
          %p153 = pneg %p57
        $region34: #{text_encoder_forward.1} parent=31 // pred_check_branch
          %155 = sbr.rel (%p153) target = $region36
        $region35: #{text_encoder_forward.1} parent=31 // pred_region
          %156 = dma.done [#allocation3], 12288
        $region36: #{text_encoder_forward.1} parent=31 // pred_fallthru
          _
        %p157 = scmp.lt.s32.totalorder %s15, 1
        %s158 = scalar_select %p157, %s15, 1
        %s159 = smul.addr %s158, 8
        %s160 = scalar_lea.vmem %s0, %s159
        %p161 = pneg %p36
        %p162 = pneg %p33
        %p163 = pneg %p57
        %p164 = pneg %p54
        %p165 = pneg %p78
        %p166 = pneg %p75
        %p167 = pneg %p104
        %p168 = pneg %p101
        %p169 = scmp.lt.s32.totalorder %s15, 1
        %s170 = scalar_select %p169, %s15, 1
        %s171 = smul.addr %s170, 8
        %s172 = scalar_lea.vmem %s3, %s171
        %p173 = scmp.lt.s32.totalorder %s15, 1
        %s174 = scalar_select %p173, %s15, 1
        %s175 = smul.addr %s174, 8
        %s176 = scalar_lea.vmem %s0, %s175
        %p177 = scmp.lt.s32.totalorder %s15, 1
        %s178 = scalar_select %p177, %s15, 1
        %s179 = smul.addr %s178, 8
        %s180 = scalar_lea.vmem %s3, %s179
        %v182 = vld [vmem:[%s2] sm:$0xff]
        %v183 = vld [vmem:[%s2 + $0x8] sm:$0xff]
        %v184 = vld [vmem:[%s2 + $0x10] sm:$0xff]
        %v185 = vld [vmem:[%s176] sm:$0xff]
        %v186 = vlaneseq
        %v187 = vand.u32 %v186, 127
        %vm188 = vcmp.lt.s32.totalorder %v187, 32
        %189 = vadd.xlane.f32.xlu0 %v185
        %v190 = vpop.xlane.xlu0 %189
        %v191 = vmul.f32 %v190, 0.03125
        %v192 = vsub.f32 %v185, %v191
        %v193 = vmul.f32 %v192, %v192
        %v194 = vsel %vm188, %v193, 0.0
        %195 = vadd.xlane.f32.xlu0 %v194
        %v196 = vpop.xlane.xlu0 %195
        %v197 = vmul.f32 %v196, 0.03125
        %v198 = vadd.f32 %v197, 1e-12
        %v199 = vrsqrt.pop %v198
        %v200 = vmul.f32 %v192, %v199
        %v201 = vlaneseq
        %v202 = vshrl.u32 %v201, 7
        %v203 = vsub.s32 0, %v202
        %v204 = vrot.slane %v182, %v203
        %v205 = vmul.f32 %v200, %v204
        %v206 = vlaneseq
        %v207 = vshrl.u32 %v206, 7
        %v208 = vsub.s32 1, %v207
        %v209 = vrot.slane %v182, %v208
        %v210 = vadd.f32 %v205, %v209
        %v211 = vld [vmem:[#allocation2] sm:$0xff]
        %v212 = vld [vmem:[#allocation2 + $0x8] sm:$0xf]
        %v213 = vld [vmem:[#allocation2 + $0x18] sm:$0xff]
        %v214 = vld [vmem:[#allocation2 + $0x20] sm:$0xf]
        %v215 = vld [vmem:[#allocation2 + $0x30] sm:$0xff]
        %v216 = vld [vmem:[#allocation2 + $0x38] sm:$0xf]
        %v217 = vld [vmem:[#allocation2 + $0x48] sm:$0xff]
        %v218 = vld [vmem:[#allocation2 + $0x50] sm:$0xf]
        %v219 = vld [vmem:[#allocation2 + $0x60] sm:$0xff]
        %v220 = vld [vmem:[#allocation2 + $0x68] sm:$0xf]
        %v221 = vld [vmem:[#allocation2 + $0x78] sm:$0xff]
        %v222 = vld [vmem:[#allocation2 + $0x80] sm:$0xf]
        %v223 = vld [vmem:[#allocation2 + $0x90] sm:$0xff]
        %v224 = vld [vmem:[#allocation2 + $0x98] sm:$0xf]
        %v225 = vld [vmem:[#allocation2 + $0xa8] sm:$0xff]
        %v226 = vld [vmem:[#allocation2 + $0xb0] sm:$0xf]
        %v227 = vld [vmem:[#allocation2 + $0xc0] sm:$0xff]
        %v228 = vld [vmem:[#allocation2 + $0xc8] sm:$0xf]
        %v229 = vld [vmem:[#allocation2 + $0xd8] sm:$0xff]
        %v230 = vld [vmem:[#allocation2 + $0xe0] sm:$0xf]
        %v231 = vld [vmem:[#allocation2 + $0xf0] sm:$0xff]
        %v232 = vld [vmem:[#allocation2 + $0xf8] sm:$0xf]
        %v233 = vld [vmem:[#allocation2 + $0x108] sm:$0xff]
        %v234 = vld [vmem:[#allocation2 + $0x110] sm:$0xf]
        %v235 = vld [vmem:[#allocation2 + $0x120] sm:$0xff]
        %v236 = vld [vmem:[#allocation2 + $0x128] sm:$0xf]
        %v237 = vld [vmem:[#allocation2 + $0x138] sm:$0xff]
        %v238 = vld [vmem:[#allocation2 + $0x140] sm:$0xf]
        %v239 = vld [vmem:[#allocation2 + $0x150] sm:$0xff]
        %v240 = vld [vmem:[#allocation2 + $0x158] sm:$0xf]
        %v241 = vld [vmem:[#allocation2 + $0x168] sm:$0xff]
        %v242 = vld [vmem:[#allocation2 + $0x170] sm:$0xf]
        %v243 = vld [vmem:[#allocation2 + $0xc] sm:$0xf]
        %v244 = vld [vmem:[#allocation2 + $0x24] sm:$0xf]
        %v245 = vld [vmem:[#allocation2 + $0x3c] sm:$0xf]
        %v246 = vld [vmem:[#allocation2 + $0x54] sm:$0xf]
        %v247 = vld [vmem:[#allocation2 + $0x6c] sm:$0xf]
        %v248 = vld [vmem:[#allocation2 + $0x84] sm:$0xf]
        %v249 = vld [vmem:[#allocation2 + $0x9c] sm:$0xf]
        %v250 = vld [vmem:[#allocation2 + $0xb4] sm:$0xf]
        %v251 = vld [vmem:[#allocation2 + $0xcc] sm:$0xf]
        %v252 = vld [vmem:[#allocation2 + $0xe4] sm:$0xf]
        %v253 = vld [vmem:[#allocation2 + $0xfc] sm:$0xf]
        %v254 = vld [vmem:[#allocation2 + $0x114] sm:$0xf]
        %v255 = vld [vmem:[#allocation2 + $0x12c] sm:$0xf]
        %v256 = vld [vmem:[#allocation2 + $0x144] sm:$0xf]
        %v257 = vld [vmem:[#allocation2 + $0x15c] sm:$0xf]
        %v258 = vld [vmem:[#allocation2 + $0x174] sm:$0xf]
        %v259 = vld [vmem:[#allocation2 + $0x10] sm:$0xf]
        %v260 = vld [vmem:[#allocation2 + $0x28] sm:$0xf]
        %v261 = vld [vmem:[#allocation2 + $0x40] sm:$0xf]
        %v262 = vld [vmem:[#allocation2 + $0x58] sm:$0xf]
        %v263 = vld [vmem:[#allocation2 + $0x70] sm:$0xf]
        %v264 = vld [vmem:[#allocation2 + $0x88] sm:$0xf]
        %v265 = vld [vmem:[#allocation2 + $0xa0] sm:$0xf]
        %v266 = vld [vmem:[#allocation2 + $0xb8] sm:$0xf]
        %v267 = vld [vmem:[#allocation2 + $0xd0] sm:$0xf]
        %v268 = vld [vmem:[#allocation2 + $0xe8] sm:$0xf]
        %v269 = vld [vmem:[#allocation2 + $0x100] sm:$0xf]
        %v270 = vld [vmem:[#allocation2 + $0x118] sm:$0xf]
        %v271 = vld [vmem:[#allocation2 + $0x130] sm:$0xf]
        %v272 = vld [vmem:[#allocation2 + $0x148] sm:$0xf]
        %v273 = vld [vmem:[#allocation2 + $0x160] sm:$0xf]
        %v274 = vld [vmem:[#allocation2 + $0x178] sm:$0xf]
        %v275 = vld [vmem:[#allocation2 + $0x14] sm:$0xf]
        %v276 = vld [vmem:[#allocation2 + $0x2c] sm:$0xf]
        %v277 = vld [vmem:[#allocation2 + $0x44] sm:$0xf]
        %v278 = vld [vmem:[#allocation2 + $0x5c] sm:$0xf]
        %v279 = vld [vmem:[#allocation2 + $0x74] sm:$0xf]
        %v280 = vld [vmem:[#allocation2 + $0x8c] sm:$0xf]
        %v281 = vld [vmem:[#allocation2 + $0xa4] sm:$0xf]
        %v282 = vld [vmem:[#allocation2 + $0xbc] sm:$0xf]
        %v283 = vld [vmem:[#allocation2 + $0xd4] sm:$0xf]
        %v284 = vld [vmem:[#allocation2 + $0xec] sm:$0xf]
        %v285 = vld [vmem:[#allocation2 + $0x104] sm:$0xf]
        %v286 = vld [vmem:[#allocation2 + $0x11c] sm:$0xf]
        %v287 = vld [vmem:[#allocation2 + $0x134] sm:$0xf]
        %v288 = vld [vmem:[#allocation2 + $0x14c] sm:$0xf]
        %v289 = vld [vmem:[#allocation2 + $0x164] sm:$0xf]
        %v290 = vld [vmem:[#allocation2 + $0x17c] sm:$0xf]
        %v291 = vpack.c.bf16 %v210, %v210
        %v324 = vunpack.c.l.b16 %v211
        %v325 = vunpack.c.h.b16 %v211
        %v326 = vunpack.c.l.b16 %v212
        %v327 = vunpack.c.l.b16 %v213
        %v328 = vunpack.c.h.b16 %v213
        %v329 = vunpack.c.l.b16 %v214
        %v330 = vunpack.c.l.b16 %v215
        %v331 = vunpack.c.h.b16 %v215
        %v332 = vunpack.c.l.b16 %v216
        %v333 = vunpack.c.l.b16 %v217
        %v334 = vunpack.c.h.b16 %v217
        %v335 = vunpack.c.l.b16 %v218
        %v336 = vunpack.c.l.b16 %v219
        %v337 = vunpack.c.h.b16 %v219
        %v338 = vunpack.c.l.b16 %v220
        %v339 = vunpack.c.l.b16 %v221
        %v340 = vunpack.c.h.b16 %v221
        %v341 = vunpack.c.l.b16 %v222
        %v342 = vunpack.c.l.b16 %v223
        %v343 = vunpack.c.h.b16 %v223
        %v344 = vunpack.c.l.b16 %v224
        %v345 = vunpack.c.l.b16 %v225
        %v346 = vunpack.c.h.b16 %v225
        %v347 = vunpack.c.l.b16 %v226
        %v348 = vunpack.c.l.b16 %v227
        %v349 = vunpack.c.h.b16 %v227
        %v350 = vunpack.c.l.b16 %v228
        %v351 = vunpack.c.l.b16 %v229
        %v352 = vunpack.c.h.b16 %v229
        %v353 = vunpack.c.l.b16 %v230
        %v354 = vunpack.c.l.b16 %v231
        %v355 = vunpack.c.h.b16 %v231
        %v356 = vunpack.c.l.b16 %v232
        %v357 = vunpack.c.l.b16 %v233
        %v358 = vunpack.c.h.b16 %v233
        %v359 = vunpack.c.l.b16 %v234
        %v360 = vunpack.c.l.b16 %v235
        %v361 = vunpack.c.h.b16 %v235
        %v362 = vunpack.c.l.b16 %v236
        %v363 = vunpack.c.l.b16 %v237
        %v364 = vunpack.c.h.b16 %v237
        %v365 = vunpack.c.l.b16 %v238
        %v366 = vunpack.c.l.b16 %v239
        %v367 = vunpack.c.h.b16 %v239
        %v368 = vunpack.c.l.b16 %v240
        %v369 = vunpack.c.l.b16 %v241
        %v370 = vunpack.c.h.b16 %v241
        %v371 = vunpack.c.l.b16 %v242
        %v372 = vpack.c.b16 %v327, %v324
        %v373 = vpack.c.b16 %v328, %v325
        %v374 = vpack.c.b16 %v329, %v326
        %v375 = vpack.c.b16 %v333, %v330
        %v376 = vpack.c.b16 %v334, %v331
        %v377 = vpack.c.b16 %v335, %v332
        %v378 = vpack.c.b16 %v339, %v336
        %v379 = vpack.c.b16 %v340, %v337
        %v380 = vpack.c.b16 %v341, %v338
        %v381 = vpack.c.b16 %v345, %v342
        %v382 = vpack.c.b16 %v346, %v343
        %v383 = vpack.c.b16 %v347, %v344
        %v384 = vpack.c.b16 %v351, %v348
        %v385 = vpack.c.b16 %v352, %v349
        %v386 = vpack.c.b16 %v353, %v350
        %v387 = vpack.c.b16 %v357, %v354
        %v388 = vpack.c.b16 %v358, %v355
        %v389 = vpack.c.b16 %v359, %v356
        %v390 = vpack.c.b16 %v363, %v360
        %v391 = vpack.c.b16 %v364, %v361
        %v392 = vpack.c.b16 %v365, %v362
        %v393 = vpack.c.b16 %v369, %v366
        %v394 = vpack.c.b16 %v370, %v367
        %v395 = vpack.c.b16 %v371, %v368
        %420 = vmatprep.subr.bf16.mxu0 %v373
        %421 = vmatpush1.bf16.msra.mxu0 %v372
        %422 = vmatprep.subr.bf16.mxu0 %v376
        %423 = vmatpush1.bf16.msra.mxu0 %v375
        %424 = vmatprep.subr.bf16.mxu0 %v379
        %425 = vmatpush1.bf16.msra.mxu0 %v378
        %426 = vmatprep.subr.bf16.mxu0 %v382
        %427 = vmatpush1.bf16.msra.mxu0 %v381
        %428 = vmatprep.subr.bf16.mxu0 %v385
        %429 = vmatpush1.bf16.msra.mxu0 %v384
        %430 = vmatprep.subr.bf16.mxu0 %v388
        %431 = vmatpush1.bf16.msra.mxu0 %v387
        %432 = vmatprep.subr.bf16.mxu0 %v391
        %433 = vmatpush1.bf16.msra.mxu0 %v390
        %434 = vmatprep.subr.bf16.mxu0 %v394
        %435 = vmatpush1.bf16.msra.mxu0 %v393
        %436 = vmatprep.subr.bf16.mxu0 0
        %437 = vmatpush1.bf16.msra.mxu0 0
        %438 = vmatprep.subr.bf16.mxu0 0
        %439 = vmatpush1.bf16.msra.mxu0 0
        %440 = vmatprep.subr.bf16.mxu0 0
        %441 = vmatpush1.bf16.msra.mxu0 0
        %442 = vmatprep.subr.bf16.mxu0 0
        %443 = vmatpush1.bf16.msra.mxu0 0
        %444 = vmatprep.subr.bf16.mxu0 0
        %445 = vmatpush1.bf16.msra.mxu0 0
        %446 = vmatprep.subr.bf16.mxu0 0
        %447 = vmatpush1.bf16.msra.mxu0 0
        %448 = vmatprep.subr.bf16.mxu0 0
        %449 = vmatpush1.bf16.msra.mxu0 0
        %450 = vmatprep.subr.bf16.mxu0 0
        %451 = vmatpush1.bf16.msra.mxu0 0
        %452 = vmatprep.mubr.bf16.mxu0 0
        %453 = vmatmul.mubr.bf16.gmra.mrb[0].mxu0 %v291
        %v454 = vpop.f32.mrb[0].mxu0
        %v455 = vadd.f32 0.0, %v454
        %v456 = vpop.f32.mrb[0].mxu0
        %v457 = vadd.f32 0.0, %v456
        %v458 = vpop.f32.mrb[0].mxu0
        %v459 = vpop.f32.mrb[0].mxu0
        %460 = vdwg.mxu0
        %461 = vmatprep.subr.bf16.mxu0 0
        %462 = vmatpush1.bf16.msra.mxu0 %v374
        %463 = vmatprep.subr.bf16.mxu0 0
        %464 = vmatpush1.bf16.msra.mxu0 %v377
        %465 = vmatprep.subr.bf16.mxu0 0
        %466 = vmatpush1.bf16.msra.mxu0 %v380
        %467 = vmatprep.subr.bf16.mxu0 0
        %468 = vmatpush1.bf16.msra.mxu0 %v383
        %469 = vmatprep.subr.bf16.mxu0 0
        %470 = vmatpush1.bf16.msra.mxu0 %v386
        %471 = vmatprep.subr.bf16.mxu0 0
        %472 = vmatpush1.bf16.msra.mxu0 %v389
        %473 = vmatprep.subr.bf16.mxu0 0
        %474 = vmatpush1.bf16.msra.mxu0 %v392
        %475 = vmatprep.subr.bf16.mxu0 0
        %476 = vmatpush1.bf16.msra.mxu0 %v395
        %477 = vmatprep.subr.bf16.mxu0 0
        %478 = vmatpush1.bf16.msra.mxu0 0
        %479 = vmatprep.subr.bf16.mxu0 0
        %480 = vmatpush1.bf16.msra.mxu0 0
        %481 = vmatprep.subr.bf16.mxu0 0
        %482 = vmatpush1.bf16.msra.mxu0 0
        %483 = vmatprep.subr.bf16.mxu0 0
        %484 = vmatpush1.bf16.msra.mxu0 0
        %485 = vmatprep.subr.bf16.mxu0 0
        %486 = vmatpush1.bf16.msra.mxu0 0
        %487 = vmatprep.subr.bf16.mxu0 0
        %488 = vmatpush1.bf16.msra.mxu0 0
        %489 = vmatprep.subr.bf16.mxu0 0
        %490 = vmatpush1.bf16.msra.mxu0 0
        %491 = vmatprep.subr.bf16.mxu0 0
        %492 = vmatpush1.bf16.msra.mxu0 0
        %493 = vmatprep.mubr.bf16.mxu0 0
        %494 = vmatmul.mubr.bf16.gmra.mrb[0].mxu0 %v291
        %v495 = vpop.f32.mrb[0].mxu0
        %v496 = vadd.f32 0.0, %v495
        %v497 = vpop.f32.mrb[0].mxu0
        %v498 = vpop.f32.mrb[0].mxu0
        %v499 = vpop.f32.mrb[0].mxu0
        %500 = vdwg.mxu0
        %v501 = vlaneseq
        %v502 = vshrl.u32 %v501, 7
        %v503 = vsub.s32 2, %v502
        %v504 = vrot.slane %v182, %v503
        %v505 = vadd.f32 %v455, %v504
        %v506 = vlaneseq
        %v507 = vshrl.u32 %v506, 7
        %v508 = vsub.s32 3, %v507
        %v509 = vrot.slane %v182, %v508
        %v510 = vadd.f32 %v457, %v509
        %v511 = vlaneseq
        %v512 = vshrl.u32 %v511, 7
        %v513 = vsub.s32 4, %v512
        %v514 = vrot.slane %v182, %v513
        %v515 = vadd.f32 %v496, %v514
        %vm516 = vcmp.ge.s32.totalorder %v187, 0
        %vm517 = vcmp.lt.s32.totalorder %v187, 16
        %vm518 = vmand %vm516, %vm517
        %v519 = vsel %vm518, %v510, 0.0
        %vm520 = vcmp.ge.s32.totalorder %v187, 16
        %vm521 = vmand %vm520, %vm188
        %v522 = vsel %vm521, %v510, 0.0
        %v523 = vpack.c.bf16 %v522, %v519
        %v524 = vsel %vm518, %v515, 0.0
        %v525 = vsel %vm521, %v515, 0.0
        %v526 = vpack.c.bf16 %v525, %v524
        %v527 = vpack.c.bf16 %v505, %v505
        %528 = vmatprep.subr.bf16.mxu0 0
        %529 = vmatpush1.bf16.xpose.msra.mxu0 %v523
        %530 = vmatprep.subr.bf16.mxu0 0
        %531 = vmatpush1.bf16.xpose.msra.mxu0 0
        %532 = vmatprep.subr.bf16.mxu0 0
        %533 = vmatpush1.bf16.xpose.msra.mxu0 0
        %534 = vmatprep.subr.bf16.mxu0 0
        %535 = vmatpush1.bf16.xpose.msra.mxu0 0
        %536 = vmatprep.subr.bf16.mxu0 0
        %537 = vmatpush1.bf16.xpose.msra.mxu0 0
        %538 = vmatprep.subr.bf16.mxu0 0
        %539 = vmatpush1.bf16.xpose.msra.mxu0 0
        %540 = vmatprep.subr.bf16.mxu0 0
        %541 = vmatpush1.bf16.xpose.msra.mxu0 0
        %542 = vmatprep.subr.bf16.mxu0 0
        %543 = vmatpush1.bf16.xpose.msra.mxu0 0
        %544 = vmatprep.subr.bf16.mxu0 0
        %545 = vmatpush1.bf16.xpose.msra.mxu0 0
        %546 = vmatprep.subr.bf16.mxu0 0
        %547 = vmatpush1.bf16.xpose.msra.mxu0 0
        %548 = vmatprep.subr.bf16.mxu0 0
        %549 = vmatpush1.bf16.xpose.msra.mxu0 0
        %550 = vmatprep.subr.bf16.mxu0 0
        %551 = vmatpush1.bf16.xpose.msra.mxu0 0
        %552 = vmatprep.subr.bf16.mxu0 0
        %553 = vmatpush1.bf16.xpose.msra.mxu0 0
        %554 = vmatprep.subr.bf16.mxu0 0
        %555 = vmatpush1.bf16.xpose.msra.mxu0 0
        %556 = vmatprep.subr.bf16.mxu0 0
        %557 = vmatpush1.bf16.xpose.msra.mxu0 0
        %558 = vmatprep.subr.bf16.mxu0 0
        %559 = vmatpush1.bf16.xpose.msra.mxu0 0
        %560 = vmatprep.mubr.bf16.mxu0 0
        %561 = vmatmul.mubr.bf16.gmra.mrb[0].mxu0 %v527
        %v562 = vpop.f32.mrb[0].mxu0
        %v563 = vadd.f32 0.0, %v562
        %v564 = vpop.f32.mrb[0].mxu0
        %v565 = vpop.f32.mrb[0].mxu0
        %v566 = vpop.f32.mrb[0].mxu0
        %567 = vdwg.mxu0
        %vm568 = vcmp.lt.s32.totalorder %v187, 8
        %vm569 = vmand %vm516, %vm568
        %v570 = vsel %vm569, %v563, -1e+30
        %vm571 = vcmask 130048
        %v572 = vsel %vm571, %v570, -inf
        %573 = vmax.xlane.f32.xlu0 %v572
        %v574 = vpop.xlane.xlu0 %573
        %v575 = vsub.f32 %v563, %v574
        %v576 = vmul.f32 %v575, 1.442695
        %v577 = vpow.pop %v576
        %v578 = vsel %vm569, %v577, 0.0
        %v579 = vsel %vm571, %v578, 0.0
        %580 = vadd.xlane.f32.xlu0 %v579
        %v581 = vpop.xlane.xlu0 %580
        %v582 = vrcp.pop %v581
        %v583 = vmul.f32 %v578, %v582
        %v584 = vadd.f32 %v583, 0.0
        %vm585 = vcmp.ge.s32.totalorder %v187, 8
        %vm586 = vmand %vm585, %vm517
        %v587 = vsel %vm586, %v563, -1e+30
        %v588 = vsel %vm571, %v587, -inf
        %589 = vmax.xlane.f32.xlu0 %v588
        %v590 = vpop.xlane.xlu0 %589
        %v591 = vsub.f32 %v563, %v590
        %v592 = vmul.f32 %v591, 1.442695
        %v593 = vpow.pop %v592
        %v594 = vsel %vm586, %v593, 0.0
        %v595 = vsel %vm571, %v594, 0.0
        %596 = vadd.xlane.f32.xlu0 %v595
        %v597 = vpop.xlane.xlu0 %596
        %v598 = vrcp.pop %v597
        %v599 = vmul.f32 %v594, %v598
        %v600 = vadd.f32 %v584, %v599
        %v601 = vpack.c.bf16 %v600, %v600
        %v603 = vsel %vm571, %v601, 0
        %605 = vmatprep.subr.bf16.mxu0 0
        %606 = vmatpush1.bf16.msra.mxu0 %v526
        %607 = vmatprep.subr.bf16.mxu0 0
        %608 = vmatpush1.bf16.msra.mxu0 0
        %609 = vmatprep.subr.bf16.mxu0 0
        %610 = vmatpush1.bf16.msra.mxu0 0
        %611 = vmatprep.subr.bf16.mxu0 0
        %612 = vmatpush1.bf16.msra.mxu0 0
        %613 = vmatprep.subr.bf16.mxu0 0
        %614 = vmatpush1.bf16.msra.mxu0 0
        %615 = vmatprep.subr.bf16.mxu0 0
        %616 = vmatpush1.bf16.msra.mxu0 0
        %617 = vmatprep.subr.bf16.mxu0 0
        %618 = vmatpush1.bf16.msra.mxu0 0
        %619 = vmatprep.subr.bf16.mxu0 0
        %620 = vmatpush1.bf16.msra.mxu0 0
        %621 = vmatprep.subr.bf16.mxu0 0
        %622 = vmatpush1.bf16.msra.mxu0 0
        %623 = vmatprep.subr.bf16.mxu0 0
        %624 = vmatpush1.bf16.msra.mxu0 0
        %625 = vmatprep.subr.bf16.mxu0 0
        %626 = vmatpush1.bf16.msra.mxu0 0
        %627 = vmatprep.subr.bf16.mxu0 0
        %628 = vmatpush1.bf16.msra.mxu0 0
        %629 = vmatprep.subr.bf16.mxu0 0
        %630 = vmatpush1.bf16.msra.mxu0 0
        %631 = vmatprep.subr.bf16.mxu0 0
        %632 = vmatpush1.bf16.msra.mxu0 0
        %633 = vmatprep.subr.bf16.mxu0 0
        %634 = vmatpush1.bf16.msra.mxu0 0
        %635 = vmatprep.subr.bf16.mxu0 0
        %636 = vmatpush1.bf16.msra.mxu0 0
        %637 = vmatprep.mubr.bf16.mxu0 0
        %638 = vmatmul.mubr.bf16.gmra.mrb[0].mxu0 %v603
        %v639 = vpop.f32.mrb[0].mxu0
        %v640 = vadd.f32 0.0, %v639
        %v641 = vpop.f32.mrb[0].mxu0
        %v642 = vpop.f32.mrb[0].mxu0
        %v643 = vpop.f32.mrb[0].mxu0
        %644 = vdwg.mxu0
        %v645 = vpack.c.bf16 %v640, %v640
        %v646 = vlaneseq
        %v647 = vshrl.u32 %v646, 7
        %v648 = vsub.s32 5, %v647
        %v649 = vrot.slane %v182, %v648
        %v666 = vunpack.c.l.b16 %v243
        %v667 = vunpack.c.l.b16 %v244
        %v668 = vunpack.c.l.b16 %v245
        %v669 = vunpack.c.l.b16 %v246
        %v670 = vunpack.c.l.b16 %v247
        %v671 = vunpack.c.l.b16 %v248
        %v672 = vunpack.c.l.b16 %v249
        %v673 = vunpack.c.l.b16 %v250
        %v674 = vunpack.c.l.b16 %v251
        %v675 = vunpack.c.l.b16 %v252
        %v676 = vunpack.c.l.b16 %v253
        %v677 = vunpack.c.l.b16 %v254
        %v678 = vunpack.c.l.b16 %v255
        %v679 = vunpack.c.l.b16 %v256
        %v680 = vunpack.c.l.b16 %v257
        %v681 = vunpack.c.l.b16 %v258
        %v682 = vpack.c.b16 %v667, %v666
        %v683 = vpack.c.b16 %v669, %v668
        %v684 = vpack.c.b16 %v671, %v670
        %v685 = vpack.c.b16 %v673, %v672
        %v686 = vpack.c.b16 %v675, %v674
        %v687 = vpack.c.b16 %v677, %v676
        %v688 = vpack.c.b16 %v679, %v678
        %v689 = vpack.c.b16 %v681, %v680
        %698 = vmatprep.subr.bf16.mxu0 0
        %699 = vmatpush1.bf16.msra.mxu0 %v682
        %700 = vmatprep.subr.bf16.mxu0 0
        %701 = vmatpush1.bf16.msra.mxu0 %v683
        %702 = vmatprep.subr.bf16.mxu0 0
        %703 = vmatpush1.bf16.msra.mxu0 %v684
        %704 = vmatprep.subr.bf16.mxu0 0
        %705 = vmatpush1.bf16.msra.mxu0 %v685
        %706 = vmatprep.subr.bf16.mxu0 0
        %707 = vmatpush1.bf16.msra.mxu0 %v686
        %708 = vmatprep.subr.bf16.mxu0 0
        %709 = vmatpush1.bf16.msra.mxu0 %v687
        %710 = vmatprep.subr.bf16.mxu0 0
        %711 = vmatpush1.bf16.msra.mxu0 %v688
        %712 = vmatprep.subr.bf16.mxu0 0
        %713 = vmatpush1.bf16.msra.mxu0 %v689
        %714 = vmatprep.subr.bf16.mxu0 0
        %715 = vmatpush1.bf16.msra.mxu0 0
        %716 = vmatprep.subr.bf16.mxu0 0
        %717 = vmatpush1.bf16.msra.mxu0 0
        %718 = vmatprep.subr.bf16.mxu0 0
        %719 = vmatpush1.bf16.msra.mxu0 0
        %720 = vmatprep.subr.bf16.mxu0 0
        %721 = vmatpush1.bf16.msra.mxu0 0
        %722 = vmatprep.subr.bf16.mxu0 0
        %723 = vmatpush1.bf16.msra.mxu0 0
        %724 = vmatprep.subr.bf16.mxu0 0
        %725 = vmatpush1.bf16.msra.mxu0 0
        %726 = vmatprep.subr.bf16.mxu0 0
        %727 = vmatpush1.bf16.msra.mxu0 0
        %728 = vmatprep.subr.bf16.mxu0 0
        %729 = vmatpush1.bf16.msra.mxu0 0
        %730 = vmatprep.mubr.bf16.mxu0 0
        %731 = vmatmul.mubr.bf16.gmra.mrb[0].mxu0 %v645
        %v732 = vpop.f32.mrb[0].mxu0
        %v733 = vadd.f32 %v649, %v732
        %v734 = vpop.f32.mrb[0].mxu0
        %v735 = vpop.f32.mrb[0].mxu0
        %v736 = vpop.f32.mrb[0].mxu0
        %737 = vdwg.mxu0
        %v738 = vadd.f32 %v733, %v210
        %739 = vadd.xlane.f32.xlu0 %v738
        %v740 = vpop.xlane.xlu0 %739
        %v741 = vmul.f32 %v740, 0.03125
        %v742 = vsub.f32 %v738, %v741
        %v743 = vmul.f32 %v742, %v742
        %v744 = vsel %vm188, %v743, 0.0
        %745 = vadd.xlane.f32.xlu0 %v744
        %v746 = vpop.xlane.xlu0 %745
        %v747 = vmul.f32 %v746, 0.03125
        %v748 = vadd.f32 %v747, 1e-12
        %v749 = vrsqrt.pop %v748
        %v750 = vmul.f32 %v742, %v749
        %v751 = vlaneseq
        %v752 = vshrl.u32 %v751, 7
        %v753 = vsub.s32 6, %v752
        %v754 = vrot.slane %v182, %v753
        %v755 = vmul.f32 %v750, %v754
        %v756 = vlaneseq
        %v757 = vshrl.u32 %v756, 7
        %v758 = vsub.s32 7, %v757
        %v759 = vrot.slane %v182, %v758
        %v760 = vadd.f32 %v755, %v759
        %v761 = vpack.c.bf16 %v760, %v760
        %v762 = vlaneseq
        %v763 = vshrl.u32 %v762, 7
        %v764 = vsub.s32 0, %v763
        %v765 = vrot.slane %v183, %v764
        %v782 = vunpack.c.l.b16 %v259
        %v783 = vunpack.c.l.b16 %v260
        %v784 = vunpack.c.l.b16 %v261
        %v785 = vunpack.c.l.b16 %v262
        %v786 = vunpack.c.l.b16 %v263
        %v787 = vunpack.c.l.b16 %v264
        %v788 = vunpack.c.l.b16 %v265
        %v789 = vunpack.c.l.b16 %v266
        %v790 = vunpack.c.l.b16 %v267
        %v791 = vunpack.c.l.b16 %v268
        %v792 = vunpack.c.l.b16 %v269
        %v793 = vunpack.c.l.b16 %v270
        %v794 = vunpack.c.l.b16 %v271
        %v795 = vunpack.c.l.b16 %v272
        %v796 = vunpack.c.l.b16 %v273
        %v797 = vunpack.c.l.b16 %v274
        %v798 = vpack.c.b16 %v783, %v782
        %v799 = vpack.c.b16 %v785, %v784
        %v800 = vpack.c.b16 %v787, %v786
        %v801 = vpack.c.b16 %v789, %v788
        %v802 = vpack.c.b16 %v791, %v790
        %v803 = vpack.c.b16 %v793, %v792
        %v804 = vpack.c.b16 %v795, %v794
        %v805 = vpack.c.b16 %v797, %v796
        %814 = vmatprep.subr.bf16.mxu0 0
        %815 = vmatpush1.bf16.msra.mxu0 %v798
        %816 = vmatprep.subr.bf16.mxu0 0
        %817 = vmatpush1.bf16.msra.mxu0 %v799
        %818 = vmatprep.subr.bf16.mxu0 0
        %819 = vmatpush1.bf16.msra.mxu0 %v800
        %820 = vmatprep.subr.bf16.mxu0 0
        %821 = vmatpush1.bf16.msra.mxu0 %v801
        %822 = vmatprep.subr.bf16.mxu0 0
        %823 = vmatpush1.bf16.msra.mxu0 %v802
        %824 = vmatprep.subr.bf16.mxu0 0
        %825 = vmatpush1.bf16.msra.mxu0 %v803
        %826 = vmatprep.subr.bf16.mxu0 0
        %827 = vmatpush1.bf16.msra.mxu0 %v804
        %828 = vmatprep.subr.bf16.mxu0 0
        %829 = vmatpush1.bf16.msra.mxu0 %v805
        %830 = vmatprep.subr.bf16.mxu0 0
        %831 = vmatpush1.bf16.msra.mxu0 0
        %832 = vmatprep.subr.bf16.mxu0 0
        %833 = vmatpush1.bf16.msra.mxu0 0
        %834 = vmatprep.subr.bf16.mxu0 0
        %835 = vmatpush1.bf16.msra.mxu0 0
        %836 = vmatprep.subr.bf16.mxu0 0
        %837 = vmatpush1.bf16.msra.mxu0 0
        %838 = vmatprep.subr.bf16.mxu0 0
        %839 = vmatpush1.bf16.msra.mxu0 0
        %840 = vmatprep.subr.bf16.mxu0 0
        %841 = vmatpush1.bf16.msra.mxu0 0
        %842 = vmatprep.subr.bf16.mxu0 0
        %843 = vmatpush1.bf16.msra.mxu0 0
        %844 = vmatprep.subr.bf16.mxu0 0
        %845 = vmatpush1.bf16.msra.mxu0 0
        %846 = vmatprep.mubr.bf16.mxu0 0
        %847 = vmatmul.mubr.bf16.gmra.mrb[0].mxu0 %v761
        %v848 = vpop.f32.mrb[0].mxu0
        %v849 = vadd.f32 %v765, %v848
        %v850 = vpop.f32.mrb[0].mxu0
        %v851 = vpop.f32.mrb[0].mxu0
        %v852 = vpop.f32.mrb[0].mxu0
        %853 = vdwg.mxu0
        %v854 = vmul.f32 %v849, 0.5
        %v855 = vmul.f32 %v849, 0.044715
        %v856 = vmul.f32 %v855, %v849
        %v857 = vmul.f32 %v856, %v849
        %v858 = vadd.f32 %v849, %v857
        %v859 = vmul.f32 %v858, 0.7978846
        %v860 = vtanh.pop %v859
        %v861 = vadd.f32 %v860, 1.0
        %v862 = vmul.f32 %v854, %v861
        %v863 = vpack.c.bf16 %v862, %v862
        %v864 = vlaneseq
        %v865 = vshrl.u32 %v864, 7
        %v866 = vsub.s32 1, %v865
        %v867 = vrot.slane %v183, %v866
        %v884 = vunpack.c.l.b16 %v275
        %v885 = vunpack.c.l.b16 %v276
        %v886 = vunpack.c.l.b16 %v277
        %v887 = vunpack.c.l.b16 %v278
        %v888 = vunpack.c.l.b16 %v279
        %v889 = vunpack.c.l.b16 %v280
        %v890 = vunpack.c.l.b16 %v281
        %v891 = vunpack.c.l.b16 %v282
        %v892 = vunpack.c.l.b16 %v283
        %v893 = vunpack.c.l.b16 %v284
        %v894 = vunpack.c.l.b16 %v285
        %v895 = vunpack.c.l.b16 %v286
        %v896 = vunpack.c.l.b16 %v287
        %v897 = vunpack.c.l.b16 %v288
        %v898 = vunpack.c.l.b16 %v289
        %v899 = vunpack.c.l.b16 %v290
        %v900 = vpack.c.b16 %v885, %v884
        %v901 = vpack.c.b16 %v887, %v886
        %v902 = vpack.c.b16 %v889, %v888
        %v903 = vpack.c.b16 %v891, %v890
        %v904 = vpack.c.b16 %v893, %v892
        %v905 = vpack.c.b16 %v895, %v894
        %v906 = vpack.c.b16 %v897, %v896
        %v907 = vpack.c.b16 %v899, %v898
        %916 = vmatprep.subr.bf16.mxu0 0
        %917 = vmatpush1.bf16.msra.mxu0 %v900
        %918 = vmatprep.subr.bf16.mxu0 0
        %919 = vmatpush1.bf16.msra.mxu0 %v901
        %920 = vmatprep.subr.bf16.mxu0 0
        %921 = vmatpush1.bf16.msra.mxu0 %v902
        %922 = vmatprep.subr.bf16.mxu0 0
        %923 = vmatpush1.bf16.msra.mxu0 %v903
        %924 = vmatprep.subr.bf16.mxu0 0
        %925 = vmatpush1.bf16.msra.mxu0 %v904
        %926 = vmatprep.subr.bf16.mxu0 0
        %927 = vmatpush1.bf16.msra.mxu0 %v905
        %928 = vmatprep.subr.bf16.mxu0 0
        %929 = vmatpush1.bf16.msra.mxu0 %v906
        %930 = vmatprep.subr.bf16.mxu0 0
        %931 = vmatpush1.bf16.msra.mxu0 %v907
        %932 = vmatprep.subr.bf16.mxu0 0
        %933 = vmatpush1.bf16.msra.mxu0 0
        %934 = vmatprep.subr.bf16.mxu0 0
        %935 = vmatpush1.bf16.msra.mxu0 0
        %936 = vmatprep.subr.bf16.mxu0 0
        %937 = vmatpush1.bf16.msra.mxu0 0
        %938 = vmatprep.subr.bf16.mxu0 0
        %939 = vmatpush1.bf16.msra.mxu0 0
        %940 = vmatprep.subr.bf16.mxu0 0
        %941 = vmatpush1.bf16.msra.mxu0 0
        %942 = vmatprep.subr.bf16.mxu0 0
        %943 = vmatpush1.bf16.msra.mxu0 0
        %944 = vmatprep.subr.bf16.mxu0 0
        %945 = vmatpush1.bf16.msra.mxu0 0
        %946 = vmatprep.subr.bf16.mxu0 0
        %947 = vmatpush1.bf16.msra.mxu0 0
        %948 = vmatprep.mubr.bf16.mxu0 0
        %949 = vmatmul.mubr.bf16.gmra.mrb[0].mxu0 %v863
        %v950 = vpop.f32.mrb[0].mxu0
        %v951 = vadd.f32 %v867, %v950
        %v952 = vpop.f32.mrb[0].mxu0
        %v953 = vpop.f32.mrb[0].mxu0
        %v954 = vpop.f32.mrb[0].mxu0
        %955 = vdwg.mxu0
        %v956 = vadd.f32 %v951, %v760
        %957 = vadd.xlane.f32.xlu0 %v956
        %v958 = vpop.xlane.xlu0 %957
        %v959 = vmul.f32 %v958, 0.03125
        %v960 = vsub.f32 %v956, %v959
        %v961 = vmul.f32 %v960, %v960
        %v962 = vsel %vm188, %v961, 0.0
        %963 = vadd.xlane.f32.xlu0 %v962
        %v964 = vpop.xlane.xlu0 %963
        %v965 = vmul.f32 %v964, 0.03125
        %v966 = vadd.f32 %v965, 1e-12
        %v967 = vrsqrt.pop %v966
        %v968 = vmul.f32 %v960, %v967
        %v969 = vlaneseq
        %v970 = vshrl.u32 %v969, 7
        %v971 = vsub.s32 2, %v970
        %v972 = vrot.slane %v183, %v971
        %v973 = vmul.f32 %v968, %v972
        %v974 = vlaneseq
        %v975 = vshrl.u32 %v974, 7
        %v976 = vsub.s32 3, %v975
        %v977 = vrot.slane %v183, %v976
        %v978 = vadd.f32 %v973, %v977
        %s979 = scalar_lea.vmem [#allocation2], 384
        %v980 = vld [vmem:[%s979] sm:$0xff]
        %v981 = vld [vmem:[%s979 + $0x8] sm:$0xf]
        %v982 = vld [vmem:[%s979 + $0x18] sm:$0xff]
        %v983 = vld [vmem:[%s979 + $0x20] sm:$0xf]
        %v984 = vld [vmem:[%s979 + $0x30] sm:$0xff]
        %v985 = vld [vmem:[%s979 + $0x38] sm:$0xf]
        %v986 = vld [vmem:[%s979 + $0x48] sm:$0xff]
        %v987 = vld [vmem:[%s979 + $0x50] sm:$0xf]
        %v988 = vld [vmem:[%s979 + $0x60] sm:$0xff]
        %v989 = vld [vmem:[%s979 + $0x68] sm:$0xf]
        %v990 = vld [vmem:[%s979 + $0x78] sm:$0xff]
        %v991 = vld [vmem:[%s979 + $0x80] sm:$0xf]
        %v992 = vld [vmem:[%s979 + $0x90] sm:$0xff]
        %v993 = vld [vmem:[%s979 + $0x98] sm:$0xf]
        %v994 = vld [vmem:[%s979 + $0xa8] sm:$0xff]
        %v995 = vld [vmem:[%s979 + $0xb0] sm:$0xf]
        %v996 = vld [vmem:[%s979 + $0xc0] sm:$0xff]
        %v997 = vld [vmem:[%s979 + $0xc8] sm:$0xf]
        %v998 = vld [vmem:[%s979 + $0xd8] sm:$0xff]
        %v999 = vld [vmem:[%s979 + $0xe0] sm:$0xf]
        %v1000 = vld [vmem:[%s979 + $0xf0] sm:$0xff]
        %v1001 = vld [vmem:[%s979 + $0xf8] sm:$0xf]
        %v1002 = vld [vmem:[%s979 + $0x108] sm:$0xff]
        %v1003 = vld [vmem:[%s979 + $0x110] sm:$0xf]
        %v1004 = vld [vmem:[%s979 + $0x120] sm:$0xff]
        %v1005 = vld [vmem:[%s979 + $0x128] sm:$0xf]
        %v1006 = vld [vmem:[%s979 + $0x138] sm:$0xff]
        %v1007 = vld [vmem:[%s979 + $0x140] sm:$0xf]
        %v1008 = vld [vmem:[%s979 + $0x150] sm:$0xff]
        %v1009 = vld [vmem:[%s979 + $0x158] sm:$0xf]
        %v1010 = vld [vmem:[%s979 + $0x168] sm:$0xff]
        %v1011 = vld [vmem:[%s979 + $0x170] sm:$0xf]
        %v1012 = vld [vmem:[%s979 + $0xc] sm:$0xf]
        %v1013 = vld [vmem:[%s979 + $0x24] sm:$0xf]
        %v1014 = vld [vmem:[%s979 + $0x3c] sm:$0xf]
        %v1015 = vld [vmem:[%s979 + $0x54] sm:$0xf]
        %v1016 = vld [vmem:[%s979 + $0x6c] sm:$0xf]
        %v1017 = vld [vmem:[%s979 + $0x84] sm:$0xf]
        %v1018 = vld [vmem:[%s979 + $0x9c] sm:$0xf]
        %v1019 = vld [vmem:[%s979 + $0xb4] sm:$0xf]
        %v1020 = vld [vmem:[%s979 + $0xcc] sm:$0xf]
        %v1021 = vld [vmem:[%s979 + $0xe4] sm:$0xf]
        %v1022 = vld [vmem:[%s979 + $0xfc] sm:$0xf]
        %v1023 = vld [vmem:[%s979 + $0x114] sm:$0xf]
        %v1024 = vld [vmem:[%s979 + $0x12c] sm:$0xf]
        %v1025 = vld [vmem:[%s979 + $0x144] sm:$0xf]
        %v1026 = vld [vmem:[%s979 + $0x15c] sm:$0xf]
        %v1027 = vld [vmem:[%s979 + $0x174] sm:$0xf]
        %v1028 = vld [vmem:[%s979 + $0x10] sm:$0xf]
        %v1029 = vld [vmem:[%s979 + $0x28] sm:$0xf]
        %v1030 = vld [vmem:[%s979 + $0x40] sm:$0xf]
        %v1031 = vld [vmem:[%s979 + $0x58] sm:$0xf]
        %v1032 = vld [vmem:[%s979 + $0x70] sm:$0xf]
        %v1033 = vld [vmem:[%s979 + $0x88] sm:$0xf]
        %v1034 = vld [vmem:[%s979 + $0xa0] sm:$0xf]
        %v1035 = vld [vmem:[%s979 + $0xb8] sm:$0xf]
        %v1036 = vld [vmem:[%s979 + $0xd0] sm:$0xf]
        %v1037 = vld [vmem:[%s979 + $0xe8] sm:$0xf]
        %v1038 = vld [vmem:[%s979 + $0x100] sm:$0xf]
        %v1039 = vld [vmem:[%s979 + $0x118] sm:$0xf]
        %v1040 = vld [vmem:[%s979 + $0x130] sm:$0xf]
        %v1041 = vld [vmem:[%s979 + $0x148] sm:$0xf]
        %v1042 = vld [vmem:[%s979 + $0x160] sm:$0xf]
        %v1043 = vld [vmem:[%s979 + $0x178] sm:$0xf]
        %v1044 = vld [vmem:[%s979 + $0x14] sm:$0xf]
        %v1045 = vld [vmem:[%s979 + $0x2c] sm:$0xf]
        %v1046 = vld [vmem:[%s979 + $0x44] sm:$0xf]
        %v1047 = vld [vmem:[%s979 + $0x5c] sm:$0xf]
        %v1048 = vld [vmem:[%s979 + $0x74] sm:$0xf]
        %v1049 = vld [vmem:[%s979 + $0x8c] sm:$0xf]
        %v1050 = vld [vmem:[%s979 + $0xa4] sm:$0xf]
        %v1051 = vld [vmem:[%s979 + $0xbc] sm:$0xf]
        %v1052 = vld [vmem:[%s979 + $0xd4] sm:$0xf]
        %v1053 = vld [vmem:[%s979 + $0xec] sm:$0xf]
        %v1054 = vld [vmem:[%s979 + $0x104] sm:$0xf]
        %v1055 = vld [vmem:[%s979 + $0x11c] sm:$0xf]
        %v1056 = vld [vmem:[%s979 + $0x134] sm:$0xf]
        %v1057 = vld [vmem:[%s979 + $0x14c] sm:$0xf]
        %v1058 = vld [vmem:[%s979 + $0x164] sm:$0xf]
        %v1059 = vld [vmem:[%s979 + $0x17c] sm:$0xf]
        %v1060 = vpack.c.bf16 %v978, %v978
        %v1093 = vunpack.c.l.b16 %v980
        %v1094 = vunpack.c.h.b16 %v980
        %v1095 = vunpack.c.l.b16 %v981
        %v1096 = vunpack.c.l.b16 %v982
        %v1097 = vunpack.c.h.b16 %v982
        %v1098 = vunpack.c.l.b16 %v983
        %v1099 = vunpack.c.l.b16 %v984
        %v1100 = vunpack.c.h.b16 %v984
        %v1101 = vunpack.c.l.b16 %v985
        %v1102 = vunpack.c.l.b16 %v986
        %v1103 = vunpack.c.h.b16 %v986
        %v1104 = vunpack.c.l.b16 %v987
        %v1105 = vunpack.c.l.b16 %v988
        %v1106 = vunpack.c.h.b16 %v988
        %v1107 = vunpack.c.l.b16 %v989
        %v1108 = vunpack.c.l.b16 %v990
        %v1109 = vunpack.c.h.b16 %v990
        %v1110 = vunpack.c.l.b16 %v991
        %v1111 = vunpack.c.l.b16 %v992
        %v1112 = vunpack.c.h.b16 %v992
        %v1113 = vunpack.c.l.b16 %v993
        %v1114 = vunpack.c.l.b16 %v994
        %v1115 = vunpack.c.h.b16 %v994
        %v1116 = vunpack.c.l.b16 %v995
        %v1117 = vunpack.c.l.b16 %v996
        %v1118 = vunpack.c.h.b16 %v996
        %v1119 = vunpack.c.l.b16 %v997
        %v1120 = vunpack.c.l.b16 %v998
        %v1121 = vunpack.c.h.b16 %v998
        %v1122 = vunpack.c.l.b16 %v999
        %v1123 = vunpack.c.l.b16 %v1000
        %v1124 = vunpack.c.h.b16 %v1000
        %v1125 = vunpack.c.l.b16 %v1001
        %v1126 = vunpack.c.l.b16 %v1002
        %v1127 = vunpack.c.h.b16 %v1002
        %v1128 = vunpack.c.l.b16 %v1003
        %v1129 = vunpack.c.l.b16 %v1004
        %v1130 = vunpack.c.h.b16 %v1004
        %v1131 = vunpack.c.l.b16 %v1005
        %v1132 = vunpack.c.l.b16 %v1006
        %v1133 = vunpack.c.h.b16 %v1006
        %v1134 = vunpack.c.l.b16 %v1007
        %v1135 = vunpack.c.l.b16 %v1008
        %v1136 = vunpack.c.h.b16 %v1008
        %v1137 = vunpack.c.l.b16 %v1009
        %v1138 = vunpack.c.l.b16 %v1010
        %v1139 = vunpack.c.h.b16 %v1010
        %v1140 = vunpack.c.l.b16 %v1011
        %v1141 = vpack.c.b16 %v1096, %v1093
        %v1142 = vpack.c.b16 %v1097, %v1094
        %v1143 = vpack.c.b16 %v1098, %v1095
        %v1144 = vpack.c.b16 %v1102, %v1099
        %v1145 = vpack.c.b16 %v1103, %v1100
        %v1146 = vpack.c.b16 %v1104, %v1101
        %v1147 = vpack.c.b16 %v1108, %v1105
        %v1148 = vpack.c.b16 %v1109, %v1106
        %v1149 = vpack.c.b16 %v1110, %v1107
        %v1150 = vpack.c.b16 %v1114, %v1111
        %v1151 = vpack.c.b16 %v1115, %v1112
        %v1152 = vpack.c.b16 %v1116, %v1113
        %v1153 = vpack.c.b16 %v1120, %v1117
        %v1154 = vpack.c.b16 %v1121, %v1118
        %v1155 = vpack.c.b16 %v1122, %v1119
        %v1156 = vpack.c.b16 %v1126, %v1123
        %v1157 = vpack.c.b16 %v1127, %v1124
        %v1158 = vpack.c.b16 %v1128, %v1125
        %v1159 = vpack.c.b16 %v1132, %v1129
        %v1160 = vpack.c.b16 %v1133, %v1130
        %v1161 = vpack.c.b16 %v1134, %v1131
        %v1162 = vpack.c.b16 %v1138, %v1135
        %v1163 = vpack.c.b16 %v1139, %v1136
        %v1164 = vpack.c.b16 %v1140, %v1137
        %1189 = vmatprep.subr.bf16.mxu0 %v1142
        %1190 = vmatpush1.bf16.msra.mxu0 %v1141
        %1191 = vmatprep.subr.bf16.mxu0 %v1145
        %1192 = vmatpush1.bf16.msra.mxu0 %v1144
        %1193 = vmatprep.subr.bf16.mxu0 %v1148
        %1194 = vmatpush1.bf16.msra.mxu0 %v1147
        %1195 = vmatprep.subr.bf16.mxu0 %v1151
        %1196 = vmatpush1.bf16.msra.mxu0 %v1150
        %1197 = vmatprep.subr.bf16.mxu0 %v1154
        %1198 = vmatpush1.bf16.msra.mxu0 %v1153
        %1199 = vmatprep.subr.bf16.mxu0 %v1157
        %1200 = vmatpush1.bf16.msra.mxu0 %v1156
        %1201 = vmatprep.subr.bf16.mxu0 %v1160
        %1202 = vmatpush1.bf16.msra.mxu0 %v1159
        %1203 = vmatprep.subr.bf16.mxu0 %v1163
        %1204 = vmatpush1.bf16.msra.mxu0 %v1162
        %1205 = vmatprep.subr.bf16.mxu0 0
        %1206 = vmatpush1.bf16.msra.mxu0 0
        %1207 = vmatprep.subr.bf16.mxu0 0
        %1208 = vmatpush1.bf16.msra.mxu0 0
        %1209 = vmatprep.subr.bf16.mxu0 0
        %1210 = vmatpush1.bf16.msra.mxu0 0
        %1211 = vmatprep.subr.bf16.mxu0 0
        %1212 = vmatpush1.bf16.msra.mxu0 0
        %1213 = vmatprep.subr.bf16.mxu0 0
        %1214 = vmatpush1.bf16.msra.mxu0 0
        %1215 = vmatprep.subr.bf16.mxu0 0
        %1216 = vmatpush1.bf16.msra.mxu0 0
        %1217 = vmatprep.subr.bf16.mxu0 0
        %1218 = vmatpush1.bf16.msra.mxu0 0
        %1219 = vmatprep.subr.bf16.mxu0 0
        %1220 = vmatpush1.bf16.msra.mxu0 0
        %1221 = vmatprep.mubr.bf16.mxu0 0
        %1222 = vmatmul.mubr.bf16.gmra.mrb[0].mxu0 %v1060
        %v1223 = vpop.f32.mrb[0].mxu0
        %v1224 = vadd.f32 0.0, %v1223
        %v1225 = vpop.f32.mrb[0].mxu0
        %v1226 = vadd.f32 0.0, %v1225
        %v1227 = vpop.f32.mrb[0].mxu0
        %v1228 = vpop.f32.mrb[0].mxu0
        %1229 = vdwg.mxu0
        %1230 = vmatprep.subr.bf16.mxu0 0
        %1231 = vmatpush1.bf16.msra.mxu0 %v1143
        %1232 = vmatprep.subr.bf16.mxu0 0
        %1233 = vmatpush1.bf16.msra.mxu0 %v1146
        %1234 = vmatprep.subr.bf16.mxu0 0
        %1235 = vmatpush1.bf16.msra.mxu0 %v1149
        %1236 = vmatprep.subr.bf16.mxu0 0
        %1237 = vmatpush1.bf16.msra.mxu0 %v1152
        %1238 = vmatprep.subr.bf16.mxu0 0
        %1239 = vmatpush1.bf16.msra.mxu0 %v1155
        %1240 = vmatprep.subr.bf16.mxu0 0
        %1241 = vmatpush1.bf16.msra.mxu0 %v1158
        %1242 = vmatprep.subr.bf16.mxu0 0
        %1243 = vmatpush1.bf16.msra.mxu0 %v1161
        %1244 = vmatprep.subr.bf16.mxu0 0
        %1245 = vmatpush1.bf16.msra.mxu0 %v1164
        %1246 = vmatprep.subr.bf16.mxu0 0
        %1247 = vmatpush1.bf16.msra.mxu0 0
        %1248 = vmatprep.subr.bf16.mxu0 0
        %1249 = vmatpush1.bf16.msra.mxu0 0
        %1250 = vmatprep.subr.bf16.mxu0 0
        %1251 = vmatpush1.bf16.msra.mxu0 0
        %1252 = vmatprep.subr.bf16.mxu0 0
        %1253 = vmatpush1.bf16.msra.mxu0 0
        %1254 = vmatprep.subr.bf16.mxu0 0
        %1255 = vmatpush1.bf16.msra.mxu0 0
        %1256 = vmatprep.subr.bf16.mxu0 0
        %1257 = vmatpush1.bf16.msra.mxu0 0
        %1258 = vmatprep.subr.bf16.mxu0 0
        %1259 = vmatpush1.bf16.msra.mxu0 0
        %1260 = vmatprep.subr.bf16.mxu0 0
        %1261 = vmatpush1.bf16.msra.mxu0 0
        %1262 = vmatprep.mubr.bf16.mxu0 0
        %1263 = vmatmul.mubr.bf16.gmra.mrb[0].mxu0 %v1060
        %v1264 = vpop.f32.mrb[0].mxu0
        %v1265 = vadd.f32 0.0, %v1264
        %v1266 = vpop.f32.mrb[0].mxu0
        %v1267 = vpop.f32.mrb[0].mxu0
        %v1268 = vpop.f32.mrb[0].mxu0
        %1269 = vdwg.mxu0
        %v1270 = vlaneseq
        %v1271 = vshrl.u32 %v1270, 7
        %v1272 = vsub.s32 4, %v1271
        %v1273 = vrot.slane %v183, %v1272
        %v1274 = vadd.f32 %v1224, %v1273
        %v1275 = vlaneseq
        %v1276 = vshrl.u32 %v1275, 7
        %v1277 = vsub.s32 5, %v1276
        %v1278 = vrot.slane %v183, %v1277
        %v1279 = vadd.f32 %v1226, %v1278
        %v1280 = vlaneseq
        %v1281 = vshrl.u32 %v1280, 7
        %v1282 = vsub.s32 6, %v1281
        %v1283 = vrot.slane %v183, %v1282
        %v1284 = vadd.f32 %v1265, %v1283
        %v1285 = vsel %vm518, %v1279, 0.0
        %v1286 = vsel %vm521, %v1279, 0.0
        %v1287 = vpack.c.bf16 %v1286, %v1285
        %v1288 = vsel %vm518, %v1284, 0.0
        %v1289 = vsel %vm521, %v1284, 0.0
        %v1290 = vpack.c.bf16 %v1289, %v1288
        %v1291 = vpack.c.bf16 %v1274, %v1274
        %1292 = vmatprep.subr.bf16.mxu0 0
        %1293 = vmatpush1.bf16.xpose.msra.mxu0 %v1287
        %1294 = vmatprep.subr.bf16.mxu0 0
        %1295 = vmatpush1.bf16.xpose.msra.mxu0 0
        %1296 = vmatprep.subr.bf16.mxu0 0
        %1297 = vmatpush1.bf16.xpose.msra.mxu0 0
        %1298 = vmatprep.subr.bf16.mxu0 0
        %1299 = vmatpush1.bf16.xpose.msra.mxu0 0
        %1300 = vmatprep.subr.bf16.mxu0 0
        %1301 = vmatpush1.bf16.xpose.msra.mxu0 0
        %1302 = vmatprep.subr.bf16.mxu0 0
        %1303 = vmatpush1.bf16.xpose.msra.mxu0 0
        %1304 = vmatprep.subr.bf16.mxu0 0
        %1305 = vmatpush1.bf16.xpose.msra.mxu0 0
        %1306 = vmatprep.subr.bf16.mxu0 0
        %1307 = vmatpush1.bf16.xpose.msra.mxu0 0
        %1308 = vmatprep.subr.bf16.mxu0 0
        %1309 = vmatpush1.bf16.xpose.msra.mxu0 0
        %1310 = vmatprep.subr.bf16.mxu0 0
        %1311 = vmatpush1.bf16.xpose.msra.mxu0 0
        %1312 = vmatprep.subr.bf16.mxu0 0
        %1313 = vmatpush1.bf16.xpose.msra.mxu0 0
        %1314 = vmatprep.subr.bf16.mxu0 0
        %1315 = vmatpush1.bf16.xpose.msra.mxu0 0
        %1316 = vmatprep.subr.bf16.mxu0 0
        %1317 = vmatpush1.bf16.xpose.msra.mxu0 0
        %1318 = vmatprep.subr.bf16.mxu0 0
        %1319 = vmatpush1.bf16.xpose.msra.mxu0 0
        %1320 = vmatprep.subr.bf16.mxu0 0
        %1321 = vmatpush1.bf16.xpose.msra.mxu0 0
        %1322 = vmatprep.subr.bf16.mxu0 0
        %1323 = vmatpush1.bf16.xpose.msra.mxu0 0
        %1324 = vmatprep.mubr.bf16.mxu0 0
        %1325 = vmatmul.mubr.bf16.gmra.mrb[0].mxu0 %v1291
        %v1326 = vpop.f32.mrb[0].mxu0
        %v1327 = vadd.f32 0.0, %v1326
        %v1328 = vpop.f32.mrb[0].mxu0
        %v1329 = vpop.f32.mrb[0].mxu0
        %v1330 = vpop.f32.mrb[0].mxu0
        %1331 = vdwg.mxu0
        %v1332 = vsel %vm569, %v1327, -1e+30
        %v1333 = vsel %vm571, %v1332, -inf
        %1334 = vmax.xlane.f32.xlu0 %v1333
        %v1335 = vpop.xlane.xlu0 %1334
        %v1336 = vsub.f32 %v1327, %v1335
        %v1337 = vmul.f32 %v1336, 1.442695
        %v1338 = vpow.pop %v1337
        %v1339 = vsel %vm569, %v1338, 0.0
        %v1340 = vsel %vm571, %v1339, 0.0
        %1341 = vadd.xlane.f32.xlu0 %v1340
        %v1342 = vpop.xlane.xlu0 %1341
        %v1343 = vrcp.pop %v1342
        %v1344 = vmul.f32 %v1339, %v1343
        %v1345 = vadd.f32 %v1344, 0.0
        %v1346 = vsel %vm586, %v1327, -1e+30
        %v1347 = vsel %vm571, %v1346, -inf
        %1348 = vmax.xlane.f32.xlu0 %v1347
        %v1349 = vpop.xlane.xlu0 %1348
        %v1350 = vsub.f32 %v1327, %v1349
        %v1351 = vmul.f32 %v1350, 1.442695
        %v1352 = vpow.pop %v1351
        %v1353 = vsel %vm586, %v1352, 0.0
        %v1354 = vsel %vm571, %v1353, 0.0
        %1355 = vadd.xlane.f32.xlu0 %v1354
        %v1356 = vpop.xlane.xlu0 %1355
        %v1357 = vrcp.pop %v1356
        %v1358 = vmul.f32 %v1353, %v1357
        %v1359 = vadd.f32 %v1345, %v1358
        %v1360 = vpack.c.bf16 %v1359, %v1359
        %v1362 = vsel %vm571, %v1360, 0
        %1364 = vmatprep.subr.bf16.mxu0 0
        %1365 = vmatpush1.bf16.msra.mxu0 %v1290
        %1366 = vmatprep.subr.bf16.mxu0 0
        %1367 = vmatpush1.bf16.msra.mxu0 0
        %1368 = vmatprep.subr.bf16.mxu0 0
        %1369 = vmatpush1.bf16.msra.mxu0 0
        %1370 = vmatprep.subr.bf16.mxu0 0
        %1371 = vmatpush1.bf16.msra.mxu0 0
        %1372 = vmatprep.subr.bf16.mxu0 0
        %1373 = vmatpush1.bf16.msra.mxu0 0
        %1374 = vmatprep.subr.bf16.mxu0 0
        %1375 = vmatpush1.bf16.msra.mxu0 0
        %1376 = vmatprep.subr.bf16.mxu0 0
        %1377 = vmatpush1.bf16.msra.mxu0 0
        %1378 = vmatprep.subr.bf16.mxu0 0
        %1379 = vmatpush1.bf16.msra.mxu0 0
        %1380 = vmatprep.subr.bf16.mxu0 0
        %1381 = vmatpush1.bf16.msra.mxu0 0
        %1382 = vmatprep.subr.bf16.mxu0 0
        %1383 = vmatpush1.bf16.msra.mxu0 0
        %1384 = vmatprep.subr.bf16.mxu0 0
        %1385 = vmatpush1.bf16.msra.mxu0 0
        %1386 = vmatprep.subr.bf16.mxu0 0
        %1387 = vmatpush1.bf16.msra.mxu0 0
        %1388 = vmatprep.subr.bf16.mxu0 0
        %1389 = vmatpush1.bf16.msra.mxu0 0
        %1390 = vmatprep.subr.bf16.mxu0 0
        %1391 = vmatpush1.bf16.msra.mxu0 0
        %1392 = vmatprep.subr.bf16.mxu0 0
        %1393 = vmatpush1.bf16.msra.mxu0 0
        %1394 = vmatprep.subr.bf16.mxu0 0
        %1395 = vmatpush1.bf16.msra.mxu0 0
        %1396 = vmatprep.mubr.bf16.mxu0 0
        %1397 = vmatmul.mubr.bf16.gmra.mrb[0].mxu0 %v1362
        %v1398 = vpop.f32.mrb[0].mxu0
        %v1399 = vadd.f32 0.0, %v1398
        %v1400 = vpop.f32.mrb[0].mxu0
        %v1401 = vpop.f32.mrb[0].mxu0
        %v1402 = vpop.f32.mrb[0].mxu0
        %1403 = vdwg.mxu0
        %v1404 = vpack.c.bf16 %v1399, %v1399
        %v1405 = vlaneseq
        %v1406 = vshrl.u32 %v1405, 7
        %v1407 = vsub.s32 7, %v1406
        %v1408 = vrot.slane %v183, %v1407
        %v1425 = vunpack.c.l.b16 %v1012
        %v1426 = vunpack.c.l.b16 %v1013
        %v1427 = vunpack.c.l.b16 %v1014
        %v1428 = vunpack.c.l.b16 %v1015
        %v1429 = vunpack.c.l.b16 %v1016
        %v1430 = vunpack.c.l.b16 %v1017
        %v1431 = vunpack.c.l.b16 %v1018
        %v1432 = vunpack.c.l.b16 %v1019
        %v1433 = vunpack.c.l.b16 %v1020
        %v1434 = vunpack.c.l.b16 %v1021
        %v1435 = vunpack.c.l.b16 %v1022
        %v1436 = vunpack.c.l.b16 %v1023
        %v1437 = vunpack.c.l.b16 %v1024
        %v1438 = vunpack.c.l.b16 %v1025
        %v1439 = vunpack.c.l.b16 %v1026
        %v1440 = vunpack.c.l.b16 %v1027
        %v1441 = vpack.c.b16 %v1426, %v1425
        %v1442 = vpack.c.b16 %v1428, %v1427
        %v1443 = vpack.c.b16 %v1430, %v1429
        %v1444 = vpack.c.b16 %v1432, %v1431
        %v1445 = vpack.c.b16 %v1434, %v1433
        %v1446 = vpack.c.b16 %v1436, %v1435
        %v1447 = vpack.c.b16 %v1438, %v1437
        %v1448 = vpack.c.b16 %v1440, %v1439
        %1457 = vmatprep.subr.bf16.mxu0 0
        %1458 = vmatpush1.bf16.msra.mxu0 %v1441
        %1459 = vmatprep.subr.bf16.mxu0 0
        %1460 = vmatpush1.bf16.msra.mxu0 %v1442
        %1461 = vmatprep.subr.bf16.mxu0 0
        %1462 = vmatpush1.bf16.msra.mxu0 %v1443
        %1463 = vmatprep.subr.bf16.mxu0 0
        %1464 = vmatpush1.bf16.msra.mxu0 %v1444
        %1465 = vmatprep.subr.bf16.mxu0 0
        %1466 = vmatpush1.bf16.msra.mxu0 %v1445
        %1467 = vmatprep.subr.bf16.mxu0 0
        %1468 = vmatpush1.bf16.msra.mxu0 %v1446
        %1469 = vmatprep.subr.bf16.mxu0 0
        %1470 = vmatpush1.bf16.msra.mxu0 %v1447
        %1471 = vmatprep.subr.bf16.mxu0 0
        %1472 = vmatpush1.bf16.msra.mxu0 %v1448
        %1473 = vmatprep.subr.bf16.mxu0 0
        %1474 = vmatpush1.bf16.msra.mxu0 0
        %1475 = vmatprep.subr.bf16.mxu0 0
        %1476 = vmatpush1.bf16.msra.mxu0 0
        %1477 = vmatprep.subr.bf16.mxu0 0
        %1478 = vmatpush1.bf16.msra.mxu0 0
        %1479 = vmatprep.subr.bf16.mxu0 0
        %1480 = vmatpush1.bf16.msra.mxu0 0
        %1481 = vmatprep.subr.bf16.mxu0 0
        %1482 = vmatpush1.bf16.msra.mxu0 0
        %1483 = vmatprep.subr.bf16.mxu0 0
        %1484 = vmatpush1.bf16.msra.mxu0 0
        %1485 = vmatprep.subr.bf16.mxu0 0
        %1486 = vmatpush1.bf16.msra.mxu0 0
        %1487 = vmatprep.subr.bf16.mxu0 0
        %1488 = vmatpush1.bf16.msra.mxu0 0
        %1489 = vmatprep.mubr.bf16.mxu0 0
        %1490 = vmatmul.mubr.bf16.gmra.mrb[0].mxu0 %v1404
        %v1491 = vpop.f32.mrb[0].mxu0
        %v1492 = vadd.f32 %v1408, %v1491
        %v1493 = vpop.f32.mrb[0].mxu0
        %v1494 = vpop.f32.mrb[0].mxu0
        %v1495 = vpop.f32.mrb[0].mxu0
        %1496 = vdwg.mxu0
        %v1497 = vadd.f32 %v1492, %v978
        %1498 = vadd.xlane.f32.xlu0 %v1497
        %v1499 = vpop.xlane.xlu0 %1498
        %v1500 = vmul.f32 %v1499, 0.03125
        %v1501 = vsub.f32 %v1497, %v1500
        %v1502 = vmul.f32 %v1501, %v1501
        %v1503 = vsel %vm188, %v1502, 0.0
        %1504 = vadd.xlane.f32.xlu0 %v1503
        %v1505 = vpop.xlane.xlu0 %1504
        %v1506 = vmul.f32 %v1505, 0.03125
        %v1507 = vadd.f32 %v1506, 1e-12
        %v1508 = vrsqrt.pop %v1507
        %v1509 = vmul.f32 %v1501, %v1508
        %v1510 = vlaneseq
        %v1511 = vshrl.u32 %v1510, 7
        %v1512 = vsub.s32 0, %v1511
        %v1513 = vrot.slane %v184, %v1512
        %v1514 = vmul.f32 %v1509, %v1513
        %v1515 = vlaneseq
        %v1516 = vshrl.u32 %v1515, 7
        %v1517 = vsub.s32 1, %v1516
        %v1518 = vrot.slane %v184, %v1517
        %v1519 = vadd.f32 %v1514, %v1518
        %v1520 = vpack.c.bf16 %v1519, %v1519
        %v1521 = vlaneseq
        %v1522 = vshrl.u32 %v1521, 7
        %v1523 = vsub.s32 2, %v1522
        %v1524 = vrot.slane %v184, %v1523
        %v1541 = vunpack.c.l.b16 %v1028
        %v1542 = vunpack.c.l.b16 %v1029
        %v1543 = vunpack.c.l.b16 %v1030
        %v1544 = vunpack.c.l.b16 %v1031
        %v1545 = vunpack.c.l.b16 %v1032
        %v1546 = vunpack.c.l.b16 %v1033
        %v1547 = vunpack.c.l.b16 %v1034
        %v1548 = vunpack.c.l.b16 %v1035
        %v1549 = vunpack.c.l.b16 %v1036
        %v1550 = vunpack.c.l.b16 %v1037
        %v1551 = vunpack.c.l.b16 %v1038
        %v1552 = vunpack.c.l.b16 %v1039
        %v1553 = vunpack.c.l.b16 %v1040
        %v1554 = vunpack.c.l.b16 %v1041
        %v1555 = vunpack.c.l.b16 %v1042
        %v1556 = vunpack.c.l.b16 %v1043
        %v1557 = vpack.c.b16 %v1542, %v1541
        %v1558 = vpack.c.b16 %v1544, %v1543
        %v1559 = vpack.c.b16 %v1546, %v1545
        %v1560 = vpack.c.b16 %v1548, %v1547
        %v1561 = vpack.c.b16 %v1550, %v1549
        %v1562 = vpack.c.b16 %v1552, %v1551
        %v1563 = vpack.c.b16 %v1554, %v1553
        %v1564 = vpack.c.b16 %v1556, %v1555
        %1573 = vmatprep.subr.bf16.mxu0 0
        %1574 = vmatpush1.bf16.msra.mxu0 %v1557
        %1575 = vmatprep.subr.bf16.mxu0 0
        %1576 = vmatpush1.bf16.msra.mxu0 %v1558
        %1577 = vmatprep.subr.bf16.mxu0 0
        %1578 = vmatpush1.bf16.msra.mxu0 %v1559
        %1579 = vmatprep.subr.bf16.mxu0 0
        %1580 = vmatpush1.bf16.msra.mxu0 %v1560
        %1581 = vmatprep.subr.bf16.mxu0 0
        %1582 = vmatpush1.bf16.msra.mxu0 %v1561
        %1583 = vmatprep.subr.bf16.mxu0 0
        %1584 = vmatpush1.bf16.msra.mxu0 %v1562
        %1585 = vmatprep.subr.bf16.mxu0 0
        %1586 = vmatpush1.bf16.msra.mxu0 %v1563
        %1587 = vmatprep.subr.bf16.mxu0 0
        %1588 = vmatpush1.bf16.msra.mxu0 %v1564
        %1589 = vmatprep.subr.bf16.mxu0 0
        %1590 = vmatpush1.bf16.msra.mxu0 0
        %1591 = vmatprep.subr.bf16.mxu0 0
        %1592 = vmatpush1.bf16.msra.mxu0 0
        %1593 = vmatprep.subr.bf16.mxu0 0
        %1594 = vmatpush1.bf16.msra.mxu0 0
        %1595 = vmatprep.subr.bf16.mxu0 0
        %1596 = vmatpush1.bf16.msra.mxu0 0
        %1597 = vmatprep.subr.bf16.mxu0 0
        %1598 = vmatpush1.bf16.msra.mxu0 0
        %1599 = vmatprep.subr.bf16.mxu0 0
        %1600 = vmatpush1.bf16.msra.mxu0 0
        %1601 = vmatprep.subr.bf16.mxu0 0
        %1602 = vmatpush1.bf16.msra.mxu0 0
        %1603 = vmatprep.subr.bf16.mxu0 0
        %1604 = vmatpush1.bf16.msra.mxu0 0
        %1605 = vmatprep.mubr.bf16.mxu0 0
        %1606 = vmatmul.mubr.bf16.gmra.mrb[0].mxu0 %v1520
        %v1607 = vpop.f32.mrb[0].mxu0
        %v1608 = vadd.f32 %v1524, %v1607
        %v1609 = vpop.f32.mrb[0].mxu0
        %v1610 = vpop.f32.mrb[0].mxu0
        %v1611 = vpop.f32.mrb[0].mxu0
        %1612 = vdwg.mxu0
        %v1613 = vmul.f32 %v1608, 0.5
        %v1614 = vmul.f32 %v1608, 0.044715
        %v1615 = vmul.f32 %v1614, %v1608
        %v1616 = vmul.f32 %v1615, %v1608
        %v1617 = vadd.f32 %v1608, %v1616
        %v1618 = vmul.f32 %v1617, 0.7978846
        %v1619 = vtanh.pop %v1618
        %v1620 = vadd.f32 %v1619, 1.0
        %v1621 = vmul.f32 %v1613, %v1620
        %v1622 = vpack.c.bf16 %v1621, %v1621
        %v1623 = vlaneseq
        %v1624 = vshrl.u32 %v1623, 7
        %v1625 = vsub.s32 3, %v1624
        %v1626 = vrot.slane %v184, %v1625
        %v1643 = vunpack.c.l.b16 %v1044
        %v1644 = vunpack.c.l.b16 %v1045
        %v1645 = vunpack.c.l.b16 %v1046
        %v1646 = vunpack.c.l.b16 %v1047
        %v1647 = vunpack.c.l.b16 %v1048
        %v1648 = vunpack.c.l.b16 %v1049
        %v1649 = vunpack.c.l.b16 %v1050
        %v1650 = vunpack.c.l.b16 %v1051
        %v1651 = vunpack.c.l.b16 %v1052
        %v1652 = vunpack.c.l.b16 %v1053
        %v1653 = vunpack.c.l.b16 %v1054
        %v1654 = vunpack.c.l.b16 %v1055
        %v1655 = vunpack.c.l.b16 %v1056
        %v1656 = vunpack.c.l.b16 %v1057
        %v1657 = vunpack.c.l.b16 %v1058
        %v1658 = vunpack.c.l.b16 %v1059
        %v1659 = vpack.c.b16 %v1644, %v1643
        %v1660 = vpack.c.b16 %v1646, %v1645
        %v1661 = vpack.c.b16 %v1648, %v1647
        %v1662 = vpack.c.b16 %v1650, %v1649
        %v1663 = vpack.c.b16 %v1652, %v1651
        %v1664 = vpack.c.b16 %v1654, %v1653
        %v1665 = vpack.c.b16 %v1656, %v1655
        %v1666 = vpack.c.b16 %v1658, %v1657
        %1675 = vmatprep.subr.bf16.mxu0 0
        %1676 = vmatpush1.bf16.msra.mxu0 %v1659
        %1677 = vmatprep.subr.bf16.mxu0 0
        %1678 = vmatpush1.bf16.msra.mxu0 %v1660
        %1679 = vmatprep.subr.bf16.mxu0 0
        %1680 = vmatpush1.bf16.msra.mxu0 %v1661
        %1681 = vmatprep.subr.bf16.mxu0 0
        %1682 = vmatpush1.bf16.msra.mxu0 %v1662
        %1683 = vmatprep.subr.bf16.mxu0 0
        %1684 = vmatpush1.bf16.msra.mxu0 %v1663
        %1685 = vmatprep.subr.bf16.mxu0 0
        %1686 = vmatpush1.bf16.msra.mxu0 %v1664
        %1687 = vmatprep.subr.bf16.mxu0 0
        %1688 = vmatpush1.bf16.msra.mxu0 %v1665
        %1689 = vmatprep.subr.bf16.mxu0 0
        %1690 = vmatpush1.bf16.msra.mxu0 %v1666
        %1691 = vmatprep.subr.bf16.mxu0 0
        %1692 = vmatpush1.bf16.msra.mxu0 0
        %1693 = vmatprep.subr.bf16.mxu0 0
        %1694 = vmatpush1.bf16.msra.mxu0 0
        %1695 = vmatprep.subr.bf16.mxu0 0
        %1696 = vmatpush1.bf16.msra.mxu0 0
        %1697 = vmatprep.subr.bf16.mxu0 0
        %1698 = vmatpush1.bf16.msra.mxu0 0
        %1699 = vmatprep.subr.bf16.mxu0 0
        %1700 = vmatpush1.bf16.msra.mxu0 0
        %1701 = vmatprep.subr.bf16.mxu0 0
        %1702 = vmatpush1.bf16.msra.mxu0 0
        %1703 = vmatprep.subr.bf16.mxu0 0
        %1704 = vmatpush1.bf16.msra.mxu0 0
        %1705 = vmatprep.subr.bf16.mxu0 0
        %1706 = vmatpush1.bf16.msra.mxu0 0
        %1707 = vmatprep.mubr.bf16.mxu0 0
        %1708 = vmatmul.mubr.bf16.gmra.mrb[0].mxu0 %v1622
        %v1709 = vpop.f32.mrb[0].mxu0
        %v1710 = vadd.f32 %v1626, %v1709
        %v1711 = vpop.f32.mrb[0].mxu0
        %v1712 = vpop.f32.mrb[0].mxu0
        %v1713 = vpop.f32.mrb[0].mxu0
        %1714 = vdwg.mxu0
        %v1715 = vadd.f32 %v1710, %v1519
        %1716 = vadd.xlane.f32.xlu0 %v1715
        %v1717 = vpop.xlane.xlu0 %1716
        %v1718 = vmul.f32 %v1717, 0.03125
        %v1719 = vsub.f32 %v1715, %v1718
        %v1720 = vmul.f32 %v1719, %v1719
        %v1721 = vsel %vm188, %v1720, 0.0
        %1722 = vadd.xlane.f32.xlu0 %v1721
        %v1723 = vpop.xlane.xlu0 %1722
        %v1724 = vmul.f32 %v1723, 0.03125
        %v1725 = vadd.f32 %v1724, 1e-12
        %v1726 = vrsqrt.pop %v1725
        %v1727 = vmul.f32 %v1719, %v1726
        %v1728 = vlaneseq
        %v1729 = vshrl.u32 %v1728, 7
        %v1730 = vsub.s32 4, %v1729
        %v1731 = vrot.slane %v184, %v1730
        %v1732 = vmul.f32 %v1727, %v1731
        %v1733 = vlaneseq
        %v1734 = vshrl.u32 %v1733, 7
        %v1735 = vsub.s32 5, %v1734
        %v1736 = vrot.slane %v184, %v1735
        %v1737 = vadd.f32 %v1732, %v1736
        %1738 = vst [vmem:[%s180] sm:$0xff] %v1737
        %p1739 = scmp.lt.s32.totalorder %s15, 1
        %s1740 = scalar_select %p1739, %s15, 1
        %s1741 = smul.addr %s1740, 8
        %s1742 = scalar_lea.vmem %s3, %s1741
        // Predicated region
        $region37: #{text_encoder_forward.1} parent=31 // pred_check
          %p1743 = pneg %p101
        $region38: #{text_encoder_forward.1} parent=31 // pred_check_branch
          %1745 = sbr.rel (%p1743) target = $region40
        $region39: #{text_encoder_forward.1} parent=31 // pred_region
          _
        $region40: #{text_encoder_forward.1} parent=31 // pred_fallthru
          _
      $region32: #{text_encoder_forward.1} parent=5 // pred_fallthru
        _
      %p1746 = scmp.le.s32.totalorder 2, %s10
      // Predicated region
      $region41: #{text_encoder_forward.1} parent=5 // pred_check
        %p1747 = pneg %p1746
      $region42: #{text_encoder_forward.1} parent=5 // pred_check_branch
        %1749 = sbr.rel (%p1747) target = $region44
      $region43: #{text_encoder_forward.1} parent=5 // pred_region
        %s1750 = ssub.s32 %s10, 2
        // Predicated region
        $region45: #{text_encoder_forward.1} parent=43 // pred_check
          %p1751 = pneg %p107
        $region46: #{text_encoder_forward.1} parent=43 // pred_check_branch
          %1753 = sbr.rel (%p1751) target = $region48
        $region47: #{text_encoder_forward.1} parent=43 // pred_region
          %p1754 = scmp.lt.s32.totalorder %s16, 1
          %s1755 = scalar_select %p1754, %s16, 1
          %s1756 = smul.addr %s1755, 8
          %s1757 = scalar_lea.vmem %s3, %s1756
        $region48: #{text_encoder_forward.1} parent=43 // pred_fallthru
          _
      $region44: #{text_encoder_forward.1} parent=5 // pred_fallthru
        _
    $region6: #{text_encoder_forward.1} parent=1 // loop_footer
      %s14 = sadd.s32 1, %s10
    $region7: #{text_encoder_forward.1} parent=1 // loop_footer_branch
      %9 = sbr.rel target = $region3
    $region8: #{text_encoder_forward.1} parent=1 // loop_exit
      _
    %1758 = vsyncpa [#allocation3], 1
    %s1759 = scalar_lea.sflag [#allocation3], 1
    %1760 = vsyncpa %s1759, 1

</llo_original>
